<compile_context>
chip_gen: v6e
topology: v6e:2x2x1
jax: 0.10.0
libtpu: 0.0.40
codegen_flags: <defaults>
</compile_context>

<pallas_src>
import jax
import jax.numpy as jnp
from jax.experimental import pallas as pl
from jax.experimental.pallas import tpu as pltpu


def relu_conv1x1_kernel(x_ref, w_ref, o_ref):
    # x_ref: (C_in, HW) f32   w_ref: (C_out, C_in) bf16   o_ref: (C_out, HW) f32
    x = jnp.maximum(x_ref[...], 0.0).astype(jnp.bfloat16)   # fused ReLU + bf16 cast
    o_ref[...] = jnp.dot(
        w_ref[...], x, preferred_element_type=jnp.float32
    ).astype(o_ref.dtype)


def prepare_weight(w_oihw):
    """(C_out, C_in, 1, 1) f32 conv weight -> (C_out, C_in) bf16 matmul weight.

    Done once, outside the per-call hot path (halves the dominant weight DMA).
    """
    C_out, C_in = w_oihw.shape[:2]
    return w_oihw.reshape(C_out, C_in).astype(jnp.bfloat16)


def relu_conv1x1(x_nchw, w_mat):
    """ReLU followed by a 1x1 conv (bias=False). NCHW in / NCHW out."""
    N, C_in, H, W = x_nchw.shape
    C_out = w_mat.shape[0]
    HW = H * W

    # Free reshape: NCHW is already (channel, spatial)-major per batch.
    x3 = x_nchw.reshape(N, C_in, HW)

    out = pl.pallas_call(
        relu_conv1x1_kernel,
        out_shape=jax.ShapeDtypeStruct((N, C_out, HW), x_nchw.dtype),
        grid_spec=pltpu.PrefetchScalarGridSpec(
            num_scalar_prefetch=0,
            grid=(N,),
            in_specs=[
                # one batch's full (C_in, HW) activation slab per step
                pl.BlockSpec((None, C_in, HW), lambda b: (b, 0, 0)),
                # whole bf16 weight, resident across the grid
                pl.BlockSpec((C_out, C_in), lambda b: (0, 0)),
            ],
            out_specs=pl.BlockSpec((None, C_out, HW), lambda b: (b, 0, 0)),
        ),
        compiler_params=pltpu.CompilerParams(
            dimension_semantics=("parallel",)),
    )(x3, w_mat)

    return out.reshape(N, C_out, H, W)


if __name__ == "__main__":
    key = jax.random.PRNGKey(0)
    kx, kw = jax.random.split(key)

    # Input matching the module: [1, 1664, 7, 7]
    x = jax.random.normal(kx, (1, 1664, 7, 7), dtype=jnp.float32)

    # Conv2d(1664, 128, kernel_size=1, bias=False) weight, deterministic init
    # (uniform in +-1/sqrt(fan_in), like PyTorch's default).
    C_in, C_out = 1664, 128
    bound = 1.0 / (C_in ** 0.5)
    w = jax.random.uniform(kw, (C_out, C_in, 1, 1), dtype=jnp.float32,
                           minval=-bound, maxval=bound)

    w_mat = prepare_weight(w)          # hoisted: done once per model, not per call
    y = relu_conv1x1(x, w_mat)
    y = jax.block_until_ready(y)

    # Reference check in plain JAX (f32); bf16 MXU inputs -> relaxed tolerance.
    ref = jnp.einsum('nchw,oc->nohw', jnp.maximum(x, 0.0),
                     w.reshape(C_out, C_in))
    assert y.shape == (1, C_out, 7, 7), y.shape
    assert jnp.allclose(y, ref, atol=3e-2, rtol=3e-2), \
        float(jnp.max(jnp.abs(y - ref)))

    print("KERNEL_OK")
</pallas_src>

<mosaic_0001>
module attributes {stable_mosaic.version = 11 : i64} {
  func.func @relu_conv1x1_kernel(%arg0: i32, %arg1: memref<1x1664x49xf32, #tpu.memory_space<vmem>>, %arg2: memref<128x1664xbf16, #tpu.memory_space<vmem>>, %arg3: memref<1x128x49xf32, #tpu.memory_space<vmem>>) attributes {dimension_semantics = [#tpu.dimension_semantics<parallel>], iteration_bounds = array<i64: 1>, scalar_prefetch = 0 : i64, scratch_operands = 0 : i64, tpu.core_type = #tpu.core_type<tc>, window_params = [{transform_indices = @transform_0, window_bounds = array<i64: 1, 1664, 49>}, {pipeline_mode = #tpu.pipeline_mode<synchronous>, transform_indices = @transform_1, window_bounds = array<i64: 128, 1664>}, {transform_indices = @transform_2, window_bounds = array<i64: 1, 128, 49>}]} {
    %c0 = arith.constant 0 : index
    %c0_0 = arith.constant 0 : index
    %c0_1 = arith.constant 0 : index
    %0 = vector.load %arg1[%c0, %c0_0, %c0_1] : memref<1x1664x49xf32, #tpu.memory_space<vmem>>, vector<1x1664x49xf32>
    %1 = vector.shape_cast %0 : vector<1x1664x49xf32> to vector<1664x49xf32>
    %cst = arith.constant 0.000000e+00 : f32
    %2 = vector.broadcast %cst : f32 to vector<1664x49xf32>
    %3 = arith.maximumf %1, %2 : vector<1664x49xf32>
    %4 = arith.truncf %3 : vector<1664x49xf32> to vector<1664x49xbf16>
    %c0_2 = arith.constant 0 : index
    %c0_3 = arith.constant 0 : index
    %5 = vector.load %arg2[%c0_2, %c0_3] : memref<128x1664xbf16, #tpu.memory_space<vmem>>, vector<128x1664xbf16>
    %cst_4 = arith.constant dense<0.000000e+00> : vector<128x49xf32>
    %6 = tpu.matmul %5, %4, %cst_4 {dimension_numbers = #tpu.dot_dimension_numbers<[1], [0], [0], [1], [0, 0, 1, 1], [], []>} : vector<128x1664xbf16>, vector<1664x49xbf16>, vector<128x49xf32> -> vector<128x49xf32>
    %c0_5 = arith.constant 0 : index
    %c0_6 = arith.constant 0 : index
    %c0_7 = arith.constant 0 : index
    %7 = vector.load %arg3[%c0_5, %c0_6, %c0_7] : memref<1x128x49xf32, #tpu.memory_space<vmem>>, vector<1x128x49xf32>
    %8 = vector.shape_cast %7 : vector<1x128x49xf32> to vector<128x49xf32>
    %9 = vector.shape_cast %6 : vector<128x49xf32> to vector<1x128x49xf32>
    tpu.vector_store %arg3[%c0_5, %c0_6, %c0_7], %9 {strides = array<i32>} : memref<1x128x49xf32, #tpu.memory_space<vmem>>, vector<1x128x49xf32>,
    return
  }
  func.func @transform_0(%arg0: i32) -> (i32, i32, i32) {
    %c0_i32 = arith.constant 0 : i32
    %c0_i32_0 = arith.constant 0 : i32
    %c0_i32_1 = arith.constant 0 : i32
    return %arg0, %c0_i32, %c0_i32_0 : i32, i32, i32
  }
  func.func @transform_1(%arg0: i32) -> (i32, i32) {
    %c0_i32 = arith.constant 0 : i32
    %c0_i32_0 = arith.constant 0 : i32
    %c0_i32_1 = arith.constant 0 : i32
    return %c0_i32, %c0_i32_0 : i32, i32
  }
  func.func @transform_2(%arg0: i32) -> (i32, i32, i32) {
    %c0_i32 = arith.constant 0 : i32
    %c0_i32_0 = arith.constant 0 : i32
    %c0_i32_1 = arith.constant 0 : i32
    return %arg0, %c0_i32, %c0_i32_0 : i32, i32, i32
  }
}

</mosaic_0001>

<llo_original>
// kernel: tpu_custom_call.1
$region0: #{tpu_custom_call.1}
  #allocation0 [shape = 'u32[]', space=smem, size = 0x4, offset = 0x4, fixed_abs, tag = 'smem constant byte address 0x4 - core index']
  #allocation1 [shape = 'u32[144,128]{1,0:T(1,128)}', space=vmem, size = 0x12000, scoped, tag = 'internal scratch']
  %s0 = inlined_call_operand.vmem [shape: f32[1,1664,49], index: 0, kind: input, shape index: {}]
  %s1 = inlined_call_operand.vmem [shape: bf16[128,1664], index: 1, kind: input, shape index: {}]
  %s2 = inlined_call_operand.vmem [shape: f32[1,128,49], index: 2, kind: output, shape index: {}]
  %s3 = sld [smem:[#allocation0]]
  $region18: #{tpu_custom_call.1} parent=0
    _
  %s5 = ssub.s32 1, %s3
  %s6 = scalar_select 0, %s5, %s3
  // Predicated region
  $region2: #{tpu_custom_call.1} parent=0 // pred_check
    _
  $region3: #{tpu_custom_call.1} parent=0 // pred_check_branch
    %8 = sbr.rel (0) target = $region5
  $region4: #{tpu_custom_call.1} parent=0 // pred_region
    _
  $region5: #{tpu_custom_call.1} parent=0 // pred_fallthru
    _
  // Predicated region
  $region6: #{tpu_custom_call.1} parent=0 // pred_check
    _
  $region7: #{tpu_custom_call.1} parent=0 // pred_check_branch
    %10 = sbr.rel (0) target = $region9
  $region8: #{tpu_custom_call.1} parent=0 // pred_region
    _
  $region9: #{tpu_custom_call.1} parent=0 // pred_fallthru
    _
  %v12 = vld [vmem:[%s0] sm:$0xff]
  %v13 = vld [vmem:[%s0 + $0x8] sm:$0xff]
  %v14 = vld [vmem:[%s0 + $0x10] sm:$0xff]
  %v15 = vld [vmem:[%s0 + $0x18] sm:$0xff]
  %v16 = vld [vmem:[%s0 + $0x20] sm:$0xff]
  %v17 = vld [vmem:[%s0 + $0x28] sm:$0xff]
  %v18 = vld [vmem:[%s0 + $0x30] sm:$0xff]
  %v19 = vld [vmem:[%s0 + $0x38] sm:$0xff]
  %v20 = vld [vmem:[%s0 + $0x40] sm:$0xff]
  %v21 = vld [vmem:[%s0 + $0x48] sm:$0xff]
  %v22 = vld [vmem:[%s0 + $0x50] sm:$0xff]
  %v23 = vld [vmem:[%s0 + $0x58] sm:$0xff]
  %v24 = vld [vmem:[%s0 + $0x60] sm:$0xff]
  %v25 = vld [vmem:[%s0 + $0x68] sm:$0xff]
  %v26 = vld [vmem:[%s0 + $0x70] sm:$0xff]
  %v27 = vld [vmem:[%s0 + $0x78] sm:$0xff]
  %v28 = vld [vmem:[%s0 + $0x80] sm:$0xff]
  %v29 = vld [vmem:[%s0 + $0x88] sm:$0xff]
  %v30 = vld [vmem:[%s0 + $0x90] sm:$0xff]
  %v31 = vld [vmem:[%s0 + $0x98] sm:$0xff]
  %v32 = vld [vmem:[%s0 + $0xa0] sm:$0xff]
  %v33 = vld [vmem:[%s0 + $0xa8] sm:$0xff]
  %v34 = vld [vmem:[%s0 + $0xb0] sm:$0xff]
  %v35 = vld [vmem:[%s0 + $0xb8] sm:$0xff]
  %v36 = vld [vmem:[%s0 + $0xc0] sm:$0xff]
  %v37 = vld [vmem:[%s0 + $0xc8] sm:$0xff]
  %v38 = vld [vmem:[%s0 + $0xd0] sm:$0xff]
  %v39 = vld [vmem:[%s0 + $0xd8] sm:$0xff]
  %v40 = vld [vmem:[%s0 + $0xe0] sm:$0xff]
  %v41 = vld [vmem:[%s0 + $0xe8] sm:$0xff]
  %v42 = vld [vmem:[%s0 + $0xf0] sm:$0xff]
  %v43 = vld [vmem:[%s0 + $0xf8] sm:$0xff]
  %v44 = vld [vmem:[%s0 + $0x100] sm:$0xff]
  %v45 = vld [vmem:[%s0 + $0x108] sm:$0xff]
  %v46 = vld [vmem:[%s0 + $0x110] sm:$0xff]
  %v47 = vld [vmem:[%s0 + $0x118] sm:$0xff]
  %v48 = vld [vmem:[%s0 + $0x120] sm:$0xff]
  %v49 = vld [vmem:[%s0 + $0x128] sm:$0xff]
  %v50 = vld [vmem:[%s0 + $0x130] sm:$0xff]
  %v51 = vld [vmem:[%s0 + $0x138] sm:$0xff]
  %v52 = vld [vmem:[%s0 + $0x140] sm:$0xff]
  %v53 = vld [vmem:[%s0 + $0x148] sm:$0xff]
  %v54 = vld [vmem:[%s0 + $0x150] sm:$0xff]
  %v55 = vld [vmem:[%s0 + $0x158] sm:$0xff]
  %v56 = vld [vmem:[%s0 + $0x160] sm:$0xff]
  %v57 = vld [vmem:[%s0 + $0x168] sm:$0xff]
  %v58 = vld [vmem:[%s0 + $0x170] sm:$0xff]
  %v59 = vld [vmem:[%s0 + $0x178] sm:$0xff]
  %v60 = vld [vmem:[%s0 + $0x180] sm:$0xff]
  %v61 = vld [vmem:[%s0 + $0x188] sm:$0xff]
  %v62 = vld [vmem:[%s0 + $0x190] sm:$0xff]
  %v63 = vld [vmem:[%s0 + $0x198] sm:$0xff]
  %v64 = vld [vmem:[%s0 + $0x1a0] sm:$0xff]
  %v65 = vld [vmem:[%s0 + $0x1a8] sm:$0xff]
  %v66 = vld [vmem:[%s0 + $0x1b0] sm:$0xff]
  %v67 = vld [vmem:[%s0 + $0x1b8] sm:$0xff]
  %v68 = vld [vmem:[%s0 + $0x1c0] sm:$0xff]
  %v69 = vld [vmem:[%s0 + $0x1c8] sm:$0xff]
  %v70 = vld [vmem:[%s0 + $0x1d0] sm:$0xff]
  %v71 = vld [vmem:[%s0 + $0x1d8] sm:$0xff]
  %v72 = vld [vmem:[%s0 + $0x1e0] sm:$0xff]
  %v73 = vld [vmem:[%s0 + $0x1e8] sm:$0xff]
  %v74 = vld [vmem:[%s0 + $0x1f0] sm:$0xff]
  %v75 = vld [vmem:[%s0 + $0x1f8] sm:$0xff]
  %v76 = vld [vmem:[%s0 + $0x200] sm:$0xff]
  %v77 = vld [vmem:[%s0 + $0x208] sm:$0xff]
  %v78 = vld [vmem:[%s0 + $0x210] sm:$0xff]
  %v79 = vld [vmem:[%s0 + $0x218] sm:$0xff]
  %v80 = vld [vmem:[%s0 + $0x220] sm:$0xff]
  %v81 = vld [vmem:[%s0 + $0x228] sm:$0xff]
  %v82 = vld [vmem:[%s0 + $0x230] sm:$0xff]
  %v83 = vld [vmem:[%s0 + $0x238] sm:$0xff]
  %v84 = vld [vmem:[%s0 + $0x240] sm:$0xff]
  %v85 = vld [vmem:[%s0 + $0x248] sm:$0xff]
  %v86 = vld [vmem:[%s0 + $0x250] sm:$0xff]
  %v87 = vld [vmem:[%s0 + $0x258] sm:$0xff]
  %v88 = vld [vmem:[%s0 + $0x260] sm:$0xff]
  %v89 = vld [vmem:[%s0 + $0x268] sm:$0xff]
  %v90 = vld [vmem:[%s0 + $0x270] sm:$0xff]
  %v91 = vld [vmem:[%s0 + $0x278] sm:$0xff]
  %v92 = vld [vmem:[%s0 + $0x280] sm:$0xff]
  %v93 = vld [vmem:[%s0 + $0x288] sm:$0xff]
  %v94 = vld [vmem:[%s0 + $0x290] sm:$0xff]
  %v95 = vld [vmem:[%s0 + $0x298] sm:$0xff]
  %v96 = vld [vmem:[%s0 + $0x2a0] sm:$0xff]
  %v97 = vld [vmem:[%s0 + $0x2a8] sm:$0xff]
  %v98 = vld [vmem:[%s0 + $0x2b0] sm:$0xff]
  %v99 = vld [vmem:[%s0 + $0x2b8] sm:$0xff]
  %v100 = vld [vmem:[%s0 + $0x2c0] sm:$0xff]
  %v101 = vld [vmem:[%s0 + $0x2c8] sm:$0xff]
  %v102 = vld [vmem:[%s0 + $0x2d0] sm:$0xff]
  %v103 = vld [vmem:[%s0 + $0x2d8] sm:$0xff]
  %v104 = vld [vmem:[%s0 + $0x2e0] sm:$0xff]
  %v105 = vld [vmem:[%s0 + $0x2e8] sm:$0xff]
  %v106 = vld [vmem:[%s0 + $0x2f0] sm:$0xff]
  %v107 = vld [vmem:[%s0 + $0x2f8] sm:$0xff]
  %v108 = vld [vmem:[%s0 + $0x300] sm:$0xff]
  %v109 = vld [vmem:[%s0 + $0x308] sm:$0xff]
  %v110 = vld [vmem:[%s0 + $0x310] sm:$0xff]
  %v111 = vld [vmem:[%s0 + $0x318] sm:$0xff]
  %v112 = vld [vmem:[%s0 + $0x320] sm:$0xff]
  %v113 = vld [vmem:[%s0 + $0x328] sm:$0xff]
  %v114 = vld [vmem:[%s0 + $0x330] sm:$0xff]
  %v115 = vld [vmem:[%s0 + $0x338] sm:$0xff]
  %v116 = vld [vmem:[%s0 + $0x340] sm:$0xff]
  %v117 = vld [vmem:[%s0 + $0x348] sm:$0xff]
  %v118 = vld [vmem:[%s0 + $0x350] sm:$0xff]
  %v119 = vld [vmem:[%s0 + $0x358] sm:$0xff]
  %v120 = vld [vmem:[%s0 + $0x360] sm:$0xff]
  %v121 = vld [vmem:[%s0 + $0x368] sm:$0xff]
  %v122 = vld [vmem:[%s0 + $0x370] sm:$0xff]
  %v123 = vld [vmem:[%s0 + $0x378] sm:$0xff]
  %v124 = vld [vmem:[%s0 + $0x380] sm:$0xff]
  %v125 = vld [vmem:[%s0 + $0x388] sm:$0xff]
  %v126 = vld [vmem:[%s0 + $0x390] sm:$0xff]
  %v127 = vld [vmem:[%s0 + $0x398] sm:$0xff]
  %v128 = vld [vmem:[%s0 + $0x3a0] sm:$0xff]
  %v129 = vld [vmem:[%s0 + $0x3a8] sm:$0xff]
  %v130 = vld [vmem:[%s0 + $0x3b0] sm:$0xff]
  %v131 = vld [vmem:[%s0 + $0x3b8] sm:$0xff]
  %v132 = vld [vmem:[%s0 + $0x3c0] sm:$0xff]
  %v133 = vld [vmem:[%s0 + $0x3c8] sm:$0xff]
  %v134 = vld [vmem:[%s0 + $0x3d0] sm:$0xff]
  %v135 = vld [vmem:[%s0 + $0x3d8] sm:$0xff]
  %v136 = vld [vmem:[%s0 + $0x3e0] sm:$0xff]
  %v137 = vld [vmem:[%s0 + $0x3e8] sm:$0xff]
  %v138 = vld [vmem:[%s0 + $0x3f0] sm:$0xff]
  %v139 = vld [vmem:[%s0 + $0x3f8] sm:$0xff]
  %v140 = vld [vmem:[%s0 + $0x400] sm:$0xff]
  %v141 = vld [vmem:[%s0 + $0x408] sm:$0xff]
  %v142 = vld [vmem:[%s0 + $0x410] sm:$0xff]
  %v143 = vld [vmem:[%s0 + $0x418] sm:$0xff]
  %v144 = vld [vmem:[%s0 + $0x420] sm:$0xff]
  %v145 = vld [vmem:[%s0 + $0x428] sm:$0xff]
  %v146 = vld [vmem:[%s0 + $0x430] sm:$0xff]
  %v147 = vld [vmem:[%s0 + $0x438] sm:$0xff]
  %v148 = vld [vmem:[%s0 + $0x440] sm:$0xff]
  %v149 = vld [vmem:[%s0 + $0x448] sm:$0xff]
  %v150 = vld [vmem:[%s0 + $0x450] sm:$0xff]
  %v151 = vld [vmem:[%s0 + $0x458] sm:$0xff]
  %v152 = vld [vmem:[%s0 + $0x460] sm:$0xff]
  %v153 = vld [vmem:[%s0 + $0x468] sm:$0xff]
  %v154 = vld [vmem:[%s0 + $0x470] sm:$0xff]
  %v155 = vld [vmem:[%s0 + $0x478] sm:$0xff]
  %v156 = vld [vmem:[%s0 + $0x480] sm:$0xff]
  %v157 = vld [vmem:[%s0 + $0x488] sm:$0xff]
  %v158 = vld [vmem:[%s0 + $0x490] sm:$0xff]
  %v159 = vld [vmem:[%s0 + $0x498] sm:$0xff]
  %v160 = vld [vmem:[%s0 + $0x4a0] sm:$0xff]
  %v161 = vld [vmem:[%s0 + $0x4a8] sm:$0xff]
  %v162 = vld [vmem:[%s0 + $0x4b0] sm:$0xff]
  %v163 = vld [vmem:[%s0 + $0x4b8] sm:$0xff]
  %v164 = vld [vmem:[%s0 + $0x4c0] sm:$0xff]
  %v165 = vld [vmem:[%s0 + $0x4c8] sm:$0xff]
  %v166 = vld [vmem:[%s0 + $0x4d0] sm:$0xff]
  %v167 = vld [vmem:[%s0 + $0x4d8] sm:$0xff]
  %v168 = vld [vmem:[%s0 + $0x4e0] sm:$0xff]
  %v169 = vld [vmem:[%s0 + $0x4e8] sm:$0xff]
  %v170 = vld [vmem:[%s0 + $0x4f0] sm:$0xff]
  %v171 = vld [vmem:[%s0 + $0x4f8] sm:$0xff]
  %v172 = vld [vmem:[%s0 + $0x500] sm:$0xff]
  %v173 = vld [vmem:[%s0 + $0x508] sm:$0xff]
  %v174 = vld [vmem:[%s0 + $0x510] sm:$0xff]
  %v175 = vld [vmem:[%s0 + $0x518] sm:$0xff]
  %v176 = vld [vmem:[%s0 + $0x520] sm:$0xff]
  %v177 = vld [vmem:[%s0 + $0x528] sm:$0xff]
  %v178 = vld [vmem:[%s0 + $0x530] sm:$0xff]
  %v179 = vld [vmem:[%s0 + $0x538] sm:$0xff]
  %v180 = vld [vmem:[%s0 + $0x540] sm:$0xff]
  %v181 = vld [vmem:[%s0 + $0x548] sm:$0xff]
  %v182 = vld [vmem:[%s0 + $0x550] sm:$0xff]
  %v183 = vld [vmem:[%s0 + $0x558] sm:$0xff]
  %v184 = vld [vmem:[%s0 + $0x560] sm:$0xff]
  %v185 = vld [vmem:[%s0 + $0x568] sm:$0xff]
  %v186 = vld [vmem:[%s0 + $0x570] sm:$0xff]
  %v187 = vld [vmem:[%s0 + $0x578] sm:$0xff]
  %v188 = vld [vmem:[%s0 + $0x580] sm:$0xff]
  %v189 = vld [vmem:[%s0 + $0x588] sm:$0xff]
  %v190 = vld [vmem:[%s0 + $0x590] sm:$0xff]
  %v191 = vld [vmem:[%s0 + $0x598] sm:$0xff]
  %v192 = vld [vmem:[%s0 + $0x5a0] sm:$0xff]
  %v193 = vld [vmem:[%s0 + $0x5a8] sm:$0xff]
  %v194 = vld [vmem:[%s0 + $0x5b0] sm:$0xff]
  %v195 = vld [vmem:[%s0 + $0x5b8] sm:$0xff]
  %v196 = vld [vmem:[%s0 + $0x5c0] sm:$0xff]
  %v197 = vld [vmem:[%s0 + $0x5c8] sm:$0xff]
  %v198 = vld [vmem:[%s0 + $0x5d0] sm:$0xff]
  %v199 = vld [vmem:[%s0 + $0x5d8] sm:$0xff]
  %v200 = vld [vmem:[%s0 + $0x5e0] sm:$0xff]
  %v201 = vld [vmem:[%s0 + $0x5e8] sm:$0xff]
  %v202 = vld [vmem:[%s0 + $0x5f0] sm:$0xff]
  %v203 = vld [vmem:[%s0 + $0x5f8] sm:$0xff]
  %v204 = vld [vmem:[%s0 + $0x600] sm:$0xff]
  %v205 = vld [vmem:[%s0 + $0x608] sm:$0xff]
  %v206 = vld [vmem:[%s0 + $0x610] sm:$0xff]
  %v207 = vld [vmem:[%s0 + $0x618] sm:$0xff]
  %v208 = vld [vmem:[%s0 + $0x620] sm:$0xff]
  %v209 = vld [vmem:[%s0 + $0x628] sm:$0xff]
  %v210 = vld [vmem:[%s0 + $0x630] sm:$0xff]
  %v211 = vld [vmem:[%s0 + $0x638] sm:$0xff]
  %v212 = vld [vmem:[%s0 + $0x640] sm:$0xff]
  %v213 = vld [vmem:[%s0 + $0x648] sm:$0xff]
  %v214 = vld [vmem:[%s0 + $0x650] sm:$0xff]
  %v215 = vld [vmem:[%s0 + $0x658] sm:$0xff]
  %v216 = vld [vmem:[%s0 + $0x660] sm:$0xff]
  %v217 = vld [vmem:[%s0 + $0x668] sm:$0xff]
  %v218 = vld [vmem:[%s0 + $0x670] sm:$0xff]
  %v219 = vld [vmem:[%s0 + $0x678] sm:$0xff]
  %v220 = vmax.f32 %v12, 0.0
  %v221 = vmax.f32 %v13, 0.0
  %v222 = vmax.f32 %v14, 0.0
  %v223 = vmax.f32 %v15, 0.0
  %v224 = vmax.f32 %v16, 0.0
  %v225 = vmax.f32 %v17, 0.0
  %v226 = vmax.f32 %v18, 0.0
  %v227 = vmax.f32 %v19, 0.0
  %v228 = vmax.f32 %v20, 0.0
  %v229 = vmax.f32 %v21, 0.0
  %v230 = vmax.f32 %v22, 0.0
  %v231 = vmax.f32 %v23, 0.0
  %v232 = vmax.f32 %v24, 0.0
  %v233 = vmax.f32 %v25, 0.0
  %v234 = vmax.f32 %v26, 0.0
  %v235 = vmax.f32 %v27, 0.0
  %v236 = vmax.f32 %v28, 0.0
  %v237 = vmax.f32 %v29, 0.0
  %v238 = vmax.f32 %v30, 0.0
  %v239 = vmax.f32 %v31, 0.0
  %v240 = vmax.f32 %v32, 0.0
  %v241 = vmax.f32 %v33, 0.0
  %v242 = vmax.f32 %v34, 0.0
  %v243 = vmax.f32 %v35, 0.0
  %v244 = vmax.f32 %v36, 0.0
  %v245 = vmax.f32 %v37, 0.0
  %v246 = vmax.f32 %v38, 0.0
  %v247 = vmax.f32 %v39, 0.0
  %v248 = vmax.f32 %v40, 0.0
  %v249 = vmax.f32 %v41, 0.0
  %v250 = vmax.f32 %v42, 0.0
  %v251 = vmax.f32 %v43, 0.0
  %v252 = vmax.f32 %v44, 0.0
  %v253 = vmax.f32 %v45, 0.0
  %v254 = vmax.f32 %v46, 0.0
  %v255 = vmax.f32 %v47, 0.0
  %v256 = vmax.f32 %v48, 0.0
  %v257 = vmax.f32 %v49, 0.0
  %v258 = vmax.f32 %v50, 0.0
  %v259 = vmax.f32 %v51, 0.0
  %v260 = vmax.f32 %v52, 0.0
  %v261 = vmax.f32 %v53, 0.0
  %v262 = vmax.f32 %v54, 0.0
  %v263 = vmax.f32 %v55, 0.0
  %v264 = vmax.f32 %v56, 0.0
  %v265 = vmax.f32 %v57, 0.0
  %v266 = vmax.f32 %v58, 0.0
  %v267 = vmax.f32 %v59, 0.0
  %v268 = vmax.f32 %v60, 0.0
  %v269 = vmax.f32 %v61, 0.0
  %v270 = vmax.f32 %v62, 0.0
  %v271 = vmax.f32 %v63, 0.0
  %v272 = vmax.f32 %v64, 0.0
  %v273 = vmax.f32 %v65, 0.0
  %v274 = vmax.f32 %v66, 0.0
  %v275 = vmax.f32 %v67, 0.0
  %v276 = vmax.f32 %v68, 0.0
  %v277 = vmax.f32 %v69, 0.0
  %v278 = vmax.f32 %v70, 0.0
  %v279 = vmax.f32 %v71, 0.0
  %v280 = vmax.f32 %v72, 0.0
  %v281 = vmax.f32 %v73, 0.0
  %v282 = vmax.f32 %v74, 0.0
  %v283 = vmax.f32 %v75, 0.0
  %v284 = vmax.f32 %v76, 0.0
  %v285 = vmax.f32 %v77, 0.0
  %v286 = vmax.f32 %v78, 0.0
  %v287 = vmax.f32 %v79, 0.0
  %v288 = vmax.f32 %v80, 0.0
  %v289 = vmax.f32 %v81, 0.0
  %v290 = vmax.f32 %v82, 0.0
  %v291 = vmax.f32 %v83, 0.0
  %v292 = vmax.f32 %v84, 0.0
  %v293 = vmax.f32 %v85, 0.0
  %v294 = vmax.f32 %v86, 0.0
  %v295 = vmax.f32 %v87, 0.0
  %v296 = vmax.f32 %v88, 0.0
  %v297 = vmax.f32 %v89, 0.0
  %v298 = vmax.f32 %v90, 0.0
  %v299 = vmax.f32 %v91, 0.0
  %v300 = vmax.f32 %v92, 0.0
  %v301 = vmax.f32 %v93, 0.0
  %v302 = vmax.f32 %v94, 0.0
  %v303 = vmax.f32 %v95, 0.0
  %v304 = vmax.f32 %v96, 0.0
  %v305 = vmax.f32 %v97, 0.0
  %v306 = vmax.f32 %v98, 0.0
  %v307 = vmax.f32 %v99, 0.0
  %v308 = vmax.f32 %v100, 0.0
  %v309 = vmax.f32 %v101, 0.0
  %v310 = vmax.f32 %v102, 0.0
  %v311 = vmax.f32 %v103, 0.0
  %v312 = vmax.f32 %v104, 0.0
  %v313 = vmax.f32 %v105, 0.0
  %v314 = vmax.f32 %v106, 0.0
  %v315 = vmax.f32 %v107, 0.0
  %v316 = vmax.f32 %v108, 0.0
  %v317 = vmax.f32 %v109, 0.0
  %v318 = vmax.f32 %v110, 0.0
  %v319 = vmax.f32 %v111, 0.0
  %v320 = vmax.f32 %v112, 0.0
  %v321 = vmax.f32 %v113, 0.0
  %v322 = vmax.f32 %v114, 0.0
  %v323 = vmax.f32 %v115, 0.0
  %v324 = vmax.f32 %v116, 0.0
  %v325 = vmax.f32 %v117, 0.0
  %v326 = vmax.f32 %v118, 0.0
  %v327 = vmax.f32 %v119, 0.0
  %v328 = vmax.f32 %v120, 0.0
  %v329 = vmax.f32 %v121, 0.0
  %v330 = vmax.f32 %v122, 0.0
  %v331 = vmax.f32 %v123, 0.0
  %v332 = vmax.f32 %v124, 0.0
  %v333 = vmax.f32 %v125, 0.0
  %v334 = vmax.f32 %v126, 0.0
  %v335 = vmax.f32 %v127, 0.0
  %v336 = vmax.f32 %v128, 0.0
  %v337 = vmax.f32 %v129, 0.0
  %v338 = vmax.f32 %v130, 0.0
  %v339 = vmax.f32 %v131, 0.0
  %v340 = vmax.f32 %v132, 0.0
  %v341 = vmax.f32 %v133, 0.0
  %v342 = vmax.f32 %v134, 0.0
  %v343 = vmax.f32 %v135, 0.0
  %v344 = vmax.f32 %v136, 0.0
  %v345 = vmax.f32 %v137, 0.0
  %v346 = vmax.f32 %v138, 0.0
  %v347 = vmax.f32 %v139, 0.0
  %v348 = vmax.f32 %v140, 0.0
  %v349 = vmax.f32 %v141, 0.0
  %v350 = vmax.f32 %v142, 0.0
  %v351 = vmax.f32 %v143, 0.0
  %v352 = vmax.f32 %v144, 0.0
  %v353 = vmax.f32 %v145, 0.0
  %v354 = vmax.f32 %v146, 0.0
  %v355 = vmax.f32 %v147, 0.0
  %v356 = vmax.f32 %v148, 0.0
  %v357 = vmax.f32 %v149, 0.0
  %v358 = vmax.f32 %v150, 0.0
  %v359 = vmax.f32 %v151, 0.0
  %v360 = vmax.f32 %v152, 0.0
  %v361 = vmax.f32 %v153, 0.0
  %v362 = vmax.f32 %v154, 0.0
  %v363 = vmax.f32 %v155, 0.0
  %v364 = vmax.f32 %v156, 0.0
  %v365 = vmax.f32 %v157, 0.0
  %v366 = vmax.f32 %v158, 0.0
  %v367 = vmax.f32 %v159, 0.0
  %v368 = vmax.f32 %v160, 0.0
  %v369 = vmax.f32 %v161, 0.0
  %v370 = vmax.f32 %v162, 0.0
  %v371 = vmax.f32 %v163, 0.0
  %v372 = vmax.f32 %v164, 0.0
  %v373 = vmax.f32 %v165, 0.0
  %v374 = vmax.f32 %v166, 0.0
  %v375 = vmax.f32 %v167, 0.0
  %v376 = vmax.f32 %v168, 0.0
  %v377 = vmax.f32 %v169, 0.0
  %v378 = vmax.f32 %v170, 0.0
  %v379 = vmax.f32 %v171, 0.0
  %v380 = vmax.f32 %v172, 0.0
  %v381 = vmax.f32 %v173, 0.0
  %v382 = vmax.f32 %v174, 0.0
  %v383 = vmax.f32 %v175, 0.0
  %v384 = vmax.f32 %v176, 0.0
  %v385 = vmax.f32 %v177, 0.0
  %v386 = vmax.f32 %v178, 0.0
  %v387 = vmax.f32 %v179, 0.0
  %v388 = vmax.f32 %v180, 0.0
  %v389 = vmax.f32 %v181, 0.0
  %v390 = vmax.f32 %v182, 0.0
  %v391 = vmax.f32 %v183, 0.0
  %v392 = vmax.f32 %v184, 0.0
  %v393 = vmax.f32 %v185, 0.0
  %v394 = vmax.f32 %v186, 0.0
  %v395 = vmax.f32 %v187, 0.0
  %v396 = vmax.f32 %v188, 0.0
  %v397 = vmax.f32 %v189, 0.0
  %v398 = vmax.f32 %v190, 0.0
  %v399 = vmax.f32 %v191, 0.0
  %v400 = vmax.f32 %v192, 0.0
  %v401 = vmax.f32 %v193, 0.0
  %v402 = vmax.f32 %v194, 0.0
  %v403 = vmax.f32 %v195, 0.0
  %v404 = vmax.f32 %v196, 0.0
  %v405 = vmax.f32 %v197, 0.0
  %v406 = vmax.f32 %v198, 0.0
  %v407 = vmax.f32 %v199, 0.0
  %v408 = vmax.f32 %v200, 0.0
  %v409 = vmax.f32 %v201, 0.0
  %v410 = vmax.f32 %v202, 0.0
  %v411 = vmax.f32 %v203, 0.0
  %v412 = vmax.f32 %v204, 0.0
  %v413 = vmax.f32 %v205, 0.0
  %v414 = vmax.f32 %v206, 0.0
  %v415 = vmax.f32 %v207, 0.0
  %v416 = vmax.f32 %v208, 0.0
  %v417 = vmax.f32 %v209, 0.0
  %v418 = vmax.f32 %v210, 0.0
  %v419 = vmax.f32 %v211, 0.0
  %v420 = vmax.f32 %v212, 0.0
  %v421 = vmax.f32 %v213, 0.0
  %v422 = vmax.f32 %v214, 0.0
  %v423 = vmax.f32 %v215, 0.0
  %v424 = vmax.f32 %v216, 0.0
  %v425 = vmax.f32 %v217, 0.0
  %v426 = vmax.f32 %v218, 0.0
  %v427 = vmax.f32 %v219, 0.0
  %v428 = vpack.c.bf16 %v221, %v220
  %v429 = vpack.c.bf16 %v223, %v222
  %v430 = vpack.c.bf16 %v225, %v224
  %v431 = vpack.c.bf16 %v227, %v226
  %v432 = vpack.c.bf16 %v229, %v228
  %v433 = vpack.c.bf16 %v231, %v230
  %v434 = vpack.c.bf16 %v233, %v232
  %v435 = vpack.c.bf16 %v235, %v234
  %v436 = vpack.c.bf16 %v237, %v236
  %v437 = vpack.c.bf16 %v239, %v238
  %v438 = vpack.c.bf16 %v241, %v240
  %v439 = vpack.c.bf16 %v243, %v242
  %v440 = vpack.c.bf16 %v245, %v244
  %v441 = vpack.c.bf16 %v247, %v246
  %v442 = vpack.c.bf16 %v249, %v248
  %v443 = vpack.c.bf16 %v251, %v250
  %v444 = vpack.c.bf16 %v253, %v252
  %v445 = vpack.c.bf16 %v255, %v254
  %v446 = vpack.c.bf16 %v257, %v256
  %v447 = vpack.c.bf16 %v259, %v258
  %v448 = vpack.c.bf16 %v261, %v260
  %v449 = vpack.c.bf16 %v263, %v262
  %v450 = vpack.c.bf16 %v265, %v264
  %v451 = vpack.c.bf16 %v267, %v266
  %v452 = vpack.c.bf16 %v269, %v268
  %v453 = vpack.c.bf16 %v271, %v270
  %v454 = vpack.c.bf16 %v273, %v272
  %v455 = vpack.c.bf16 %v275, %v274
  %v456 = vpack.c.bf16 %v277, %v276
  %v457 = vpack.c.bf16 %v279, %v278
  %v458 = vpack.c.bf16 %v281, %v280
  %v459 = vpack.c.bf16 %v283, %v282
  %v460 = vpack.c.bf16 %v285, %v284
  %v461 = vpack.c.bf16 %v287, %v286
  %v462 = vpack.c.bf16 %v289, %v288
  %v463 = vpack.c.bf16 %v291, %v290
  %v464 = vpack.c.bf16 %v293, %v292
  %v465 = vpack.c.bf16 %v295, %v294
  %v466 = vpack.c.bf16 %v297, %v296
  %v467 = vpack.c.bf16 %v299, %v298
  %v468 = vpack.c.bf16 %v301, %v300
  %v469 = vpack.c.bf16 %v303, %v302
  %v470 = vpack.c.bf16 %v305, %v304
  %v471 = vpack.c.bf16 %v307, %v306
  %v472 = vpack.c.bf16 %v309, %v308
  %v473 = vpack.c.bf16 %v311, %v310
  %v474 = vpack.c.bf16 %v313, %v312
  %v475 = vpack.c.bf16 %v315, %v314
  %v476 = vpack.c.bf16 %v317, %v316
  %v477 = vpack.c.bf16 %v319, %v318
  %v478 = vpack.c.bf16 %v321, %v320
  %v479 = vpack.c.bf16 %v323, %v322
  %v480 = vpack.c.bf16 %v325, %v324
  %v481 = vpack.c.bf16 %v327, %v326
  %v482 = vpack.c.bf16 %v329, %v328
  %v483 = vpack.c.bf16 %v331, %v330
  %v484 = vpack.c.bf16 %v333, %v332
  %v485 = vpack.c.bf16 %v335, %v334
  %v486 = vpack.c.bf16 %v337, %v336
  %v487 = vpack.c.bf16 %v339, %v338
  %v488 = vpack.c.bf16 %v341, %v340
  %v489 = vpack.c.bf16 %v343, %v342
  %v490 = vpack.c.bf16 %v345, %v344
  %v491 = vpack.c.bf16 %v347, %v346
  %v492 = vpack.c.bf16 %v349, %v348
  %v493 = vpack.c.bf16 %v351, %v350
  %v494 = vpack.c.bf16 %v353, %v352
  %v495 = vpack.c.bf16 %v355, %v354
  %v496 = vpack.c.bf16 %v357, %v356
  %v497 = vpack.c.bf16 %v359, %v358
  %v498 = vpack.c.bf16 %v361, %v360
  %v499 = vpack.c.bf16 %v363, %v362
  %v500 = vpack.c.bf16 %v365, %v364
  %v501 = vpack.c.bf16 %v367, %v366
  %v502 = vpack.c.bf16 %v369, %v368
  %v503 = vpack.c.bf16 %v371, %v370
  %v504 = vpack.c.bf16 %v373, %v372
  %v505 = vpack.c.bf16 %v375, %v374
  %v506 = vpack.c.bf16 %v377, %v376
  %v507 = vpack.c.bf16 %v379, %v378
  %v508 = vpack.c.bf16 %v381, %v380
  %v509 = vpack.c.bf16 %v383, %v382
  %v510 = vpack.c.bf16 %v385, %v384
  %v511 = vpack.c.bf16 %v387, %v386
  %v512 = vpack.c.bf16 %v389, %v388
  %v513 = vpack.c.bf16 %v391, %v390
  %v514 = vpack.c.bf16 %v393, %v392
  %v515 = vpack.c.bf16 %v395, %v394
  %v516 = vpack.c.bf16 %v397, %v396
  %v517 = vpack.c.bf16 %v399, %v398
  %v518 = vpack.c.bf16 %v401, %v400
  %v519 = vpack.c.bf16 %v403, %v402
  %v520 = vpack.c.bf16 %v405, %v404
  %v521 = vpack.c.bf16 %v407, %v406
  %v522 = vpack.c.bf16 %v409, %v408
  %v523 = vpack.c.bf16 %v411, %v410
  %v524 = vpack.c.bf16 %v413, %v412
  %v525 = vpack.c.bf16 %v415, %v414
  %v526 = vpack.c.bf16 %v417, %v416
  %v527 = vpack.c.bf16 %v419, %v418
  %v528 = vpack.c.bf16 %v421, %v420
  %v529 = vpack.c.bf16 %v423, %v422
  %v530 = vpack.c.bf16 %v425, %v424
  %v531 = vpack.c.bf16 %v427, %v426
  %v532 = vld [vmem:[%s1] sm:$0xff]
  %v533 = vld [vmem:[%s1 + $0x8] sm:$0xff]
  %v534 = vld [vmem:[%s1 + $0x10] sm:$0xff]
  %v535 = vld [vmem:[%s1 + $0x18] sm:$0xff]
  %v536 = vld [vmem:[%s1 + $0x20] sm:$0xff]
  %v537 = vld [vmem:[%s1 + $0x28] sm:$0xff]
  %v538 = vld [vmem:[%s1 + $0x30] sm:$0xf]
  %v539 = vld [vmem:[%s1 + $0x34] sm:$0xff]
  %v540 = vld [vmem:[%s1 + $0x3c] sm:$0xff]
  %v541 = vld [vmem:[%s1 + $0x44] sm:$0xff]
  %v542 = vld [vmem:[%s1 + $0x4c] sm:$0xff]
  %v543 = vld [vmem:[%s1 + $0x54] sm:$0xff]
  %v544 = vld [vmem:[%s1 + $0x5c] sm:$0xff]
  %v545 = vld [vmem:[%s1 + $0x64] sm:$0xf]
  %v546 = vld [vmem:[%s1 + $0x68] sm:$0xff]
  %v547 = vld [vmem:[%s1 + $0x70] sm:$0xff]
  %v548 = vld [vmem:[%s1 + $0x78] sm:$0xff]
  %v549 = vld [vmem:[%s1 + $0x80] sm:$0xff]
  %v550 = vld [vmem:[%s1 + $0x88] sm:$0xff]
  %v551 = vld [vmem:[%s1 + $0x90] sm:$0xff]
  %v552 = vld [vmem:[%s1 + $0x98] sm:$0xf]
  %v553 = vld [vmem:[%s1 + $0x9c] sm:$0xff]
  %v554 = vld [vmem:[%s1 + $0xa4] sm:$0xff]
  %v555 = vld [vmem:[%s1 + $0xac] sm:$0xff]
  %v556 = vld [vmem:[%s1 + $0xb4] sm:$0xff]
  %v557 = vld [vmem:[%s1 + $0xbc] sm:$0xff]
  %v558 = vld [vmem:[%s1 + $0xc4] sm:$0xff]
  %v559 = vld [vmem:[%s1 + $0xcc] sm:$0xf]
  %v560 = vld [vmem:[%s1 + $0xd0] sm:$0xff]
  %v561 = vld [vmem:[%s1 + $0xd8] sm:$0xff]
  %v562 = vld [vmem:[%s1 + $0xe0] sm:$0xff]
  %v563 = vld [vmem:[%s1 + $0xe8] sm:$0xff]
  %v564 = vld [vmem:[%s1 + $0xf0] sm:$0xff]
  %v565 = vld [vmem:[%s1 + $0xf8] sm:$0xff]
  %v566 = vld [vmem:[%s1 + $0x100] sm:$0xf]
  %v567 = vld [vmem:[%s1 + $0x104] sm:$0xff]
  %v568 = vld [vmem:[%s1 + $0x10c] sm:$0xff]
  %v569 = vld [vmem:[%s1 + $0x114] sm:$0xff]
  %v570 = vld [vmem:[%s1 + $0x11c] sm:$0xff]
  %v571 = vld [vmem:[%s1 + $0x124] sm:$0xff]
  %v572 = vld [vmem:[%s1 + $0x12c] sm:$0xff]
  %v573 = vld [vmem:[%s1 + $0x134] sm:$0xf]
  %v574 = vld [vmem:[%s1 + $0x138] sm:$0xff]
  %v575 = vld [vmem:[%s1 + $0x140] sm:$0xff]
  %v576 = vld [vmem:[%s1 + $0x148] sm:$0xff]
  %v577 = vld [vmem:[%s1 + $0x150] sm:$0xff]
  %v578 = vld [vmem:[%s1 + $0x158] sm:$0xff]
  %v579 = vld [vmem:[%s1 + $0x160] sm:$0xff]
  %v580 = vld [vmem:[%s1 + $0x168] sm:$0xf]
  %v581 = vld [vmem:[%s1 + $0x16c] sm:$0xff]
  %v582 = vld [vmem:[%s1 + $0x174] sm:$0xff]
  %v583 = vld [vmem:[%s1 + $0x17c] sm:$0xff]
  %v584 = vld [vmem:[%s1 + $0x184] sm:$0xff]
  %v585 = vld [vmem:[%s1 + $0x18c] sm:$0xff]
  %v586 = vld [vmem:[%s1 + $0x194] sm:$0xff]
  %v587 = vld [vmem:[%s1 + $0x19c] sm:$0xf]
  %v588 = vld [vmem:[%s1 + $0x1a0] sm:$0xff]
  %v589 = vld [vmem:[%s1 + $0x1a8] sm:$0xff]
  %v590 = vld [vmem:[%s1 + $0x1b0] sm:$0xff]
  %v591 = vld [vmem:[%s1 + $0x1b8] sm:$0xff]
  %v592 = vld [vmem:[%s1 + $0x1c0] sm:$0xff]
  %v593 = vld [vmem:[%s1 + $0x1c8] sm:$0xff]
  %v594 = vld [vmem:[%s1 + $0x1d0] sm:$0xf]
  %v595 = vld [vmem:[%s1 + $0x1d4] sm:$0xff]
  %v596 = vld [vmem:[%s1 + $0x1dc] sm:$0xff]
  %v597 = vld [vmem:[%s1 + $0x1e4] sm:$0xff]
  %v598 = vld [vmem:[%s1 + $0x1ec] sm:$0xff]
  %v599 = vld [vmem:[%s1 + $0x1f4] sm:$0xff]
  %v600 = vld [vmem:[%s1 + $0x1fc] sm:$0xff]
  %v601 = vld [vmem:[%s1 + $0x204] sm:$0xf]
  %v602 = vld [vmem:[%s1 + $0x208] sm:$0xff]
  %v603 = vld [vmem:[%s1 + $0x210] sm:$0xff]
  %v604 = vld [vmem:[%s1 + $0x218] sm:$0xff]
  %v605 = vld [vmem:[%s1 + $0x220] sm:$0xff]
  %v606 = vld [vmem:[%s1 + $0x228] sm:$0xff]
  %v607 = vld [vmem:[%s1 + $0x230] sm:$0xff]
  %v608 = vld [vmem:[%s1 + $0x238] sm:$0xf]
  %v609 = vld [vmem:[%s1 + $0x23c] sm:$0xff]
  %v610 = vld [vmem:[%s1 + $0x244] sm:$0xff]
  %v611 = vld [vmem:[%s1 + $0x24c] sm:$0xff]
  %v612 = vld [vmem:[%s1 + $0x254] sm:$0xff]
  %v613 = vld [vmem:[%s1 + $0x25c] sm:$0xff]
  %v614 = vld [vmem:[%s1 + $0x264] sm:$0xff]
  %v615 = vld [vmem:[%s1 + $0x26c] sm:$0xf]
  %v616 = vld [vmem:[%s1 + $0x270] sm:$0xff]
  %v617 = vld [vmem:[%s1 + $0x278] sm:$0xff]
  %v618 = vld [vmem:[%s1 + $0x280] sm:$0xff]
  %v619 = vld [vmem:[%s1 + $0x288] sm:$0xff]
  %v620 = vld [vmem:[%s1 + $0x290] sm:$0xff]
  %v621 = vld [vmem:[%s1 + $0x298] sm:$0xff]
  %v622 = vld [vmem:[%s1 + $0x2a0] sm:$0xf]
  %v623 = vld [vmem:[%s1 + $0x2a4] sm:$0xff]
  %v624 = vld [vmem:[%s1 + $0x2ac] sm:$0xff]
  %v625 = vld [vmem:[%s1 + $0x2b4] sm:$0xff]
  %v626 = vld [vmem:[%s1 + $0x2bc] sm:$0xff]
  %v627 = vld [vmem:[%s1 + $0x2c4] sm:$0xff]
  %v628 = vld [vmem:[%s1 + $0x2cc] sm:$0xff]
  %v629 = vld [vmem:[%s1 + $0x2d4] sm:$0xf]
  %v630 = vld [vmem:[%s1 + $0x2d8] sm:$0xff]
  %v631 = vld [vmem:[%s1 + $0x2e0] sm:$0xff]
  %v632 = vld [vmem:[%s1 + $0x2e8] sm:$0xff]
  %v633 = vld [vmem:[%s1 + $0x2f0] sm:$0xff]
  %v634 = vld [vmem:[%s1 + $0x2f8] sm:$0xff]
  %v635 = vld [vmem:[%s1 + $0x300] sm:$0xff]
  %v636 = vld [vmem:[%s1 + $0x308] sm:$0xf]
  %v637 = vld [vmem:[%s1 + $0x30c] sm:$0xff]
  %v638 = vld [vmem:[%s1 + $0x314] sm:$0xff]
  %v639 = vld [vmem:[%s1 + $0x31c] sm:$0xff]
  %v640 = vld [vmem:[%s1 + $0x324] sm:$0xff]
  %v641 = vld [vmem:[%s1 + $0x32c] sm:$0xff]
  %v642 = vld [vmem:[%s1 + $0x334] sm:$0xff]
  %v643 = vld [vmem:[%s1 + $0x33c] sm:$0xf]
  %v756 = vunpack.c.l.b16 %v532
  %v757 = vunpack.c.h.b16 %v532
  %v758 = vunpack.c.l.b16 %v533
  %v759 = vunpack.c.h.b16 %v533
  %v760 = vunpack.c.l.b16 %v534
  %v761 = vunpack.c.h.b16 %v534
  %v762 = vunpack.c.l.b16 %v535
  %v763 = vunpack.c.h.b16 %v535
  %v764 = vunpack.c.l.b16 %v536
  %v765 = vunpack.c.h.b16 %v536
  %v766 = vunpack.c.l.b16 %v537
  %v767 = vunpack.c.h.b16 %v537
  %v768 = vunpack.c.l.b16 %v538
  %v769 = vunpack.c.l.b16 %v539
  %v770 = vunpack.c.h.b16 %v539
  %v771 = vunpack.c.l.b16 %v540
  %v772 = vunpack.c.h.b16 %v540
  %v773 = vunpack.c.l.b16 %v541
  %v774 = vunpack.c.h.b16 %v541
  %v775 = vunpack.c.l.b16 %v542
  %v776 = vunpack.c.h.b16 %v542
  %v777 = vunpack.c.l.b16 %v543
  %v778 = vunpack.c.h.b16 %v543
  %v779 = vunpack.c.l.b16 %v544
  %v780 = vunpack.c.h.b16 %v544
  %v781 = vunpack.c.l.b16 %v545
  %v782 = vunpack.c.l.b16 %v546
  %v783 = vunpack.c.h.b16 %v546
  %v784 = vunpack.c.l.b16 %v547
  %v785 = vunpack.c.h.b16 %v547
  %v786 = vunpack.c.l.b16 %v548
  %v787 = vunpack.c.h.b16 %v548
  %v788 = vunpack.c.l.b16 %v549
  %v789 = vunpack.c.h.b16 %v549
  %v790 = vunpack.c.l.b16 %v550
  %v791 = vunpack.c.h.b16 %v550
  %v792 = vunpack.c.l.b16 %v551
  %v793 = vunpack.c.h.b16 %v551
  %v794 = vunpack.c.l.b16 %v552
  %v795 = vunpack.c.l.b16 %v553
  %v796 = vunpack.c.h.b16 %v553
  %v797 = vunpack.c.l.b16 %v554
  %v798 = vunpack.c.h.b16 %v554
  %v799 = vunpack.c.l.b16 %v555
  %v800 = vunpack.c.h.b16 %v555
  %v801 = vunpack.c.l.b16 %v556
  %v802 = vunpack.c.h.b16 %v556
  %v803 = vunpack.c.l.b16 %v557
  %v804 = vunpack.c.h.b16 %v557
  %v805 = vunpack.c.l.b16 %v558
  %v806 = vunpack.c.h.b16 %v558
  %v807 = vunpack.c.l.b16 %v559
  %v808 = vunpack.c.l.b16 %v560
  %v809 = vunpack.c.h.b16 %v560
  %v810 = vunpack.c.l.b16 %v561
  %v811 = vunpack.c.h.b16 %v561
  %v812 = vunpack.c.l.b16 %v562
  %v813 = vunpack.c.h.b16 %v562
  %v814 = vunpack.c.l.b16 %v563
  %v815 = vunpack.c.h.b16 %v563
  %v816 = vunpack.c.l.b16 %v564
  %v817 = vunpack.c.h.b16 %v564
  %v818 = vunpack.c.l.b16 %v565
  %v819 = vunpack.c.h.b16 %v565
  %v820 = vunpack.c.l.b16 %v566
  %v821 = vunpack.c.l.b16 %v567
  %v822 = vunpack.c.h.b16 %v567
  %v823 = vunpack.c.l.b16 %v568
  %v824 = vunpack.c.h.b16 %v568
  %v825 = vunpack.c.l.b16 %v569
  %v826 = vunpack.c.h.b16 %v569
  %v827 = vunpack.c.l.b16 %v570
  %v828 = vunpack.c.h.b16 %v570
  %v829 = vunpack.c.l.b16 %v571
  %v830 = vunpack.c.h.b16 %v571
  %v831 = vunpack.c.l.b16 %v572
  %v832 = vunpack.c.h.b16 %v572
  %v833 = vunpack.c.l.b16 %v573
  %v834 = vunpack.c.l.b16 %v574
  %v835 = vunpack.c.h.b16 %v574
  %v836 = vunpack.c.l.b16 %v575
  %v837 = vunpack.c.h.b16 %v575
  %v838 = vunpack.c.l.b16 %v576
  %v839 = vunpack.c.h.b16 %v576
  %v840 = vunpack.c.l.b16 %v577
  %v841 = vunpack.c.h.b16 %v577
  %v842 = vunpack.c.l.b16 %v578
  %v843 = vunpack.c.h.b16 %v578
  %v844 = vunpack.c.l.b16 %v579
  %v845 = vunpack.c.h.b16 %v579
  %v846 = vunpack.c.l.b16 %v580
  %v847 = vunpack.c.l.b16 %v581
  %v848 = vunpack.c.h.b16 %v581
  %v849 = vunpack.c.l.b16 %v582
  %v850 = vunpack.c.h.b16 %v582
  %v851 = vunpack.c.l.b16 %v583
  %v852 = vunpack.c.h.b16 %v583
  %v853 = vunpack.c.l.b16 %v584
  %v854 = vunpack.c.h.b16 %v584
  %v855 = vunpack.c.l.b16 %v585
  %v856 = vunpack.c.h.b16 %v585
  %v857 = vunpack.c.l.b16 %v586
  %v858 = vunpack.c.h.b16 %v586
  %v859 = vunpack.c.l.b16 %v587
  %v860 = vunpack.c.l.b16 %v588
  %v861 = vunpack.c.h.b16 %v588
  %v862 = vunpack.c.l.b16 %v589
  %v863 = vunpack.c.h.b16 %v589
  %v864 = vunpack.c.l.b16 %v590
  %v865 = vunpack.c.h.b16 %v590
  %v866 = vunpack.c.l.b16 %v591
  %v867 = vunpack.c.h.b16 %v591
  %v868 = vunpack.c.l.b16 %v592
  %v869 = vunpack.c.h.b16 %v592
  %v870 = vunpack.c.l.b16 %v593
  %v871 = vunpack.c.h.b16 %v593
  %v872 = vunpack.c.l.b16 %v594
  %v873 = vunpack.c.l.b16 %v595
  %v874 = vunpack.c.h.b16 %v595
  %v875 = vunpack.c.l.b16 %v596
  %v876 = vunpack.c.h.b16 %v596
  %v877 = vunpack.c.l.b16 %v597
  %v878 = vunpack.c.h.b16 %v597
  %v879 = vunpack.c.l.b16 %v598
  %v880 = vunpack.c.h.b16 %v598
  %v881 = vunpack.c.l.b16 %v599
  %v882 = vunpack.c.h.b16 %v599
  %v883 = vunpack.c.l.b16 %v600
  %v884 = vunpack.c.h.b16 %v600
  %v885 = vunpack.c.l.b16 %v601
  %v886 = vunpack.c.l.b16 %v602
  %v887 = vunpack.c.h.b16 %v602
  %v888 = vunpack.c.l.b16 %v603
  %v889 = vunpack.c.h.b16 %v603
  %v890 = vunpack.c.l.b16 %v604
  %v891 = vunpack.c.h.b16 %v604
  %v892 = vunpack.c.l.b16 %v605
  %v893 = vunpack.c.h.b16 %v605
  %v894 = vunpack.c.l.b16 %v606
  %v895 = vunpack.c.h.b16 %v606
  %v896 = vunpack.c.l.b16 %v607
  %v897 = vunpack.c.h.b16 %v607
  %v898 = vunpack.c.l.b16 %v608
  %v899 = vunpack.c.l.b16 %v609
  %v900 = vunpack.c.h.b16 %v609
  %v901 = vunpack.c.l.b16 %v610
  %v902 = vunpack.c.h.b16 %v610
  %v903 = vunpack.c.l.b16 %v611
  %v904 = vunpack.c.h.b16 %v611
  %v905 = vunpack.c.l.b16 %v612
  %v906 = vunpack.c.h.b16 %v612
  %v907 = vunpack.c.l.b16 %v613
  %v908 = vunpack.c.h.b16 %v613
  %v909 = vunpack.c.l.b16 %v614
  %v910 = vunpack.c.h.b16 %v614
  %v911 = vunpack.c.l.b16 %v615
  %v912 = vunpack.c.l.b16 %v616
  %v913 = vunpack.c.h.b16 %v616
  %v914 = vunpack.c.l.b16 %v617
  %v915 = vunpack.c.h.b16 %v617
  %v916 = vunpack.c.l.b16 %v618
  %v917 = vunpack.c.h.b16 %v618
  %v918 = vunpack.c.l.b16 %v619
  %v919 = vunpack.c.h.b16 %v619
  %v920 = vunpack.c.l.b16 %v620
  %v921 = vunpack.c.h.b16 %v620
  %v922 = vunpack.c.l.b16 %v621
  %v923 = vunpack.c.h.b16 %v621
  %v924 = vunpack.c.l.b16 %v622
  %v925 = vunpack.c.l.b16 %v623
  %v926 = vunpack.c.h.b16 %v623
  %v927 = vunpack.c.l.b16 %v624
  %v928 = vunpack.c.h.b16 %v624
  %v929 = vunpack.c.l.b16 %v625
  %v930 = vunpack.c.h.b16 %v625
  %v931 = vunpack.c.l.b16 %v626
  %v932 = vunpack.c.h.b16 %v626
  %v933 = vunpack.c.l.b16 %v627
  %v934 = vunpack.c.h.b16 %v627
  %v935 = vunpack.c.l.b16 %v628
  %v936 = vunpack.c.h.b16 %v628
  %v937 = vunpack.c.l.b16 %v629
  %v938 = vunpack.c.l.b16 %v630
  %v939 = vunpack.c.h.b16 %v630
  %v940 = vunpack.c.l.b16 %v631
  %v941 = vunpack.c.h.b16 %v631
  %v942 = vunpack.c.l.b16 %v632
  %v943 = vunpack.c.h.b16 %v632
  %v944 = vunpack.c.l.b16 %v633
  %v945 = vunpack.c.h.b16 %v633
  %v946 = vunpack.c.l.b16 %v634
  %v947 = vunpack.c.h.b16 %v634
  %v948 = vunpack.c.l.b16 %v635
  %v949 = vunpack.c.h.b16 %v635
  %v950 = vunpack.c.l.b16 %v636
  %v951 = vunpack.c.l.b16 %v637
  %v952 = vunpack.c.h.b16 %v637
  %v953 = vunpack.c.l.b16 %v638
  %v954 = vunpack.c.h.b16 %v638
  %v955 = vunpack.c.l.b16 %v639
  %v956 = vunpack.c.h.b16 %v639
  %v957 = vunpack.c.l.b16 %v640
  %v958 = vunpack.c.h.b16 %v640
  %v959 = vunpack.c.l.b16 %v641
  %v960 = vunpack.c.h.b16 %v641
  %v961 = vunpack.c.l.b16 %v642
  %v962 = vunpack.c.h.b16 %v642
  %v963 = vunpack.c.l.b16 %v643
  %v964 = vpack.c.b16 %v769, %v756
  %v965 = vpack.c.b16 %v770, %v757
  %v966 = vpack.c.b16 %v771, %v758
  %v967 = vpack.c.b16 %v772, %v759
  %v968 = vpack.c.b16 %v773, %v760
  %v969 = vpack.c.b16 %v774, %v761
  %v970 = vpack.c.b16 %v775, %v762
  %v971 = vpack.c.b16 %v776, %v763
  %v972 = vpack.c.b16 %v777, %v764
  %v973 = vpack.c.b16 %v778, %v765
  %v974 = vpack.c.b16 %v779, %v766
  %v975 = vpack.c.b16 %v780, %v767
  %v976 = vpack.c.b16 %v781, %v768
  %v977 = vpack.c.b16 %v795, %v782
  %v978 = vpack.c.b16 %v796, %v783
  %v979 = vpack.c.b16 %v797, %v784
  %v980 = vpack.c.b16 %v798, %v785
  %v981 = vpack.c.b16 %v799, %v786
  %v982 = vpack.c.b16 %v800, %v787
  %v983 = vpack.c.b16 %v801, %v788
  %v984 = vpack.c.b16 %v802, %v789
  %v985 = vpack.c.b16 %v803, %v790
  %v986 = vpack.c.b16 %v804, %v791
  %v987 = vpack.c.b16 %v805, %v792
  %v988 = vpack.c.b16 %v806, %v793
  %v989 = vpack.c.b16 %v807, %v794
  %v990 = vpack.c.b16 %v821, %v808
  %v991 = vpack.c.b16 %v822, %v809
  %v992 = vpack.c.b16 %v823, %v810
  %v993 = vpack.c.b16 %v824, %v811
  %v994 = vpack.c.b16 %v825, %v812
  %v995 = vpack.c.b16 %v826, %v813
  %v996 = vpack.c.b16 %v827, %v814
  %v997 = vpack.c.b16 %v828, %v815
  %v998 = vpack.c.b16 %v829, %v816
  %v999 = vpack.c.b16 %v830, %v817
  %v1000 = vpack.c.b16 %v831, %v818
  %v1001 = vpack.c.b16 %v832, %v819
  %v1002 = vpack.c.b16 %v833, %v820
  %v1003 = vpack.c.b16 %v847, %v834
  %v1004 = vpack.c.b16 %v848, %v835
  %v1005 = vpack.c.b16 %v849, %v836
  %v1006 = vpack.c.b16 %v850, %v837
  %v1007 = vpack.c.b16 %v851, %v838
  %v1008 = vpack.c.b16 %v852, %v839
  %v1009 = vpack.c.b16 %v853, %v840
  %v1010 = vpack.c.b16 %v854, %v841
  %v1011 = vpack.c.b16 %v855, %v842
  %v1012 = vpack.c.b16 %v856, %v843
  %v1013 = vpack.c.b16 %v857, %v844
  %v1014 = vpack.c.b16 %v858, %v845
  %v1015 = vpack.c.b16 %v859, %v846
  %v1016 = vpack.c.b16 %v873, %v860
  %v1017 = vpack.c.b16 %v874, %v861
  %v1018 = vpack.c.b16 %v875, %v862
  %v1019 = vpack.c.b16 %v876, %v863
  %v1020 = vpack.c.b16 %v877, %v864
  %v1021 = vpack.c.b16 %v878, %v865
  %v1022 = vpack.c.b16 %v879, %v866
  %v1023 = vpack.c.b16 %v880, %v867
  %v1024 = vpack.c.b16 %v881, %v868
  %v1025 = vpack.c.b16 %v882, %v869
  %v1026 = vpack.c.b16 %v883, %v870
  %v1027 = vpack.c.b16 %v884, %v871
  %v1028 = vpack.c.b16 %v885, %v872
  %v1029 = vpack.c.b16 %v899, %v886
  %v1030 = vpack.c.b16 %v900, %v887
  %v1031 = vpack.c.b16 %v901, %v888
  %v1032 = vpack.c.b16 %v902, %v889
  %v1033 = vpack.c.b16 %v903, %v890
  %v1034 = vpack.c.b16 %v904, %v891
  %v1035 = vpack.c.b16 %v905, %v892
  %v1036 = vpack.c.b16 %v906, %v893
  %v1037 = vpack.c.b16 %v907, %v894
  %v1038 = vpack.c.b16 %v908, %v895
  %v1039 = vpack.c.b16 %v909, %v896
  %v1040 = vpack.c.b16 %v910, %v897
  %v1041 = vpack.c.b16 %v911, %v898
  %v1042 = vpack.c.b16 %v925, %v912
  %v1043 = vpack.c.b16 %v926, %v913
  %v1044 = vpack.c.b16 %v927, %v914
  %v1045 = vpack.c.b16 %v928, %v915
  %v1046 = vpack.c.b16 %v929, %v916
  %v1047 = vpack.c.b16 %v930, %v917
  %v1048 = vpack.c.b16 %v931, %v918
  %v1049 = vpack.c.b16 %v932, %v919
  %v1050 = vpack.c.b16 %v933, %v920
  %v1051 = vpack.c.b16 %v934, %v921
  %v1052 = vpack.c.b16 %v935, %v922
  %v1053 = vpack.c.b16 %v936, %v923
  %v1054 = vpack.c.b16 %v937, %v924
  %v1055 = vpack.c.b16 %v951, %v938
  %v1056 = vpack.c.b16 %v952, %v939
  %v1057 = vpack.c.b16 %v953, %v940
  %v1058 = vpack.c.b16 %v954, %v941
  %v1059 = vpack.c.b16 %v955, %v942
  %v1060 = vpack.c.b16 %v956, %v943
  %v1061 = vpack.c.b16 %v957, %v944
  %v1062 = vpack.c.b16 %v958, %v945
  %v1063 = vpack.c.b16 %v959, %v946
  %v1064 = vpack.c.b16 %v960, %v947
  %v1065 = vpack.c.b16 %v961, %v948
  %v1066 = vpack.c.b16 %v962, %v949
  %v1067 = vpack.c.b16 %v963, %v950
  %1172 = vmatprep.subr.bf16.mxu0 0
  %1173 = vmatpush1.bf16.msra.mxu0 %v435
  %1174 = vmatprep.subr.bf16.mxu0 0
  %1175 = vmatpush1.bf16.msra.mxu0 %v434
  %1176 = vmatprep.subr.bf16.mxu0 0
  %1177 = vmatpush1.bf16.msra.mxu0 %v433
  %1178 = vmatprep.subr.bf16.mxu0 0
  %1179 = vmatpush1.bf16.msra.mxu0 %v432
  %1180 = vmatprep.subr.bf16.mxu0 0
  %1181 = vmatpush1.bf16.msra.mxu0 %v431
  %1182 = vmatprep.subr.bf16.mxu0 0
  %1183 = vmatpush1.bf16.msra.mxu0 %v430
  %1184 = vmatprep.subr.bf16.mxu0 0
  %1185 = vmatpush1.bf16.msra.mxu0 %v429
  %1186 = vmatprep.subr.bf16.mxu0 0
  %1187 = vmatpush1.bf16.msra.mxu0 %v428
  %1188 = vmatprep.subr.bf16.mxu0 0
  %1189 = vmatpush2.bf16.msra.mxu0 %v443
  %1190 = vmatprep.subr.bf16.mxu0 0
  %1191 = vmatpush2.bf16.msra.mxu0 %v442
  %1192 = vmatprep.subr.bf16.mxu0 0
  %1193 = vmatpush2.bf16.msra.mxu0 %v441
  %1194 = vmatprep.subr.bf16.mxu0 0
  %1195 = vmatpush2.bf16.msra.mxu0 %v440
  %1196 = vmatprep.subr.bf16.mxu0 0
  %1197 = vmatpush2.bf16.msra.mxu0 %v439
  %1198 = vmatprep.subr.bf16.mxu0 0
  %1199 = vmatpush2.bf16.msra.mxu0 %v438
  %1200 = vmatprep.subr.bf16.mxu0 0
  %1201 = vmatpush2.bf16.msra.mxu0 %v437
  %1202 = vmatprep.subr.bf16.mxu0 0
  %1203 = vmatpush2.bf16.msra.mxu0 %v436
  %1204 = vmatprep.mubr.bf16.mxu0 %v965
  %1205 = vmatmul.mubr.bf16.gmra.mxu0 %v964
  %v1206 = vpop.f32.mrf.mxu0
  %v1207 = vadd.f32 0.0, %v1206
  %v1208 = vpop.f32.mrf.mxu0
  %v1209 = vpop.f32.mrf.mxu0
  %v1210 = vadd.f32 0.0, %v1209
  %v1211 = vpop.f32.mrf.mxu0
  %1212 = vmatprep.mubr.bf16.mxu0 %v978
  %1213 = vmatmul.mubr.bf16.gmra.mxu0 %v977
  %v1214 = vpop.f32.mrf.mxu0
  %v1215 = vadd.f32 0.0, %v1214
  %v1216 = vpop.f32.mrf.mxu0
  %v1217 = vpop.f32.mrf.mxu0
  %v1218 = vadd.f32 0.0, %v1217
  %v1219 = vpop.f32.mrf.mxu0
  %1220 = vmatprep.mubr.bf16.mxu0 %v991
  %1221 = vmatmul.mubr.bf16.gmra.mxu0 %v990
  %v1222 = vpop.f32.mrf.mxu0
  %v1223 = vadd.f32 0.0, %v1222
  %v1224 = vpop.f32.mrf.mxu0
  %v1225 = vpop.f32.mrf.mxu0
  %v1226 = vadd.f32 0.0, %v1225
  %v1227 = vpop.f32.mrf.mxu0
  %1228 = vmatprep.mubr.bf16.mxu0 %v1004
  %1229 = vmatmul.mubr.bf16.gmra.mxu0 %v1003
  %v1230 = vpop.f32.mrf.mxu0
  %v1231 = vadd.f32 0.0, %v1230
  %v1232 = vpop.f32.mrf.mxu0
  %v1233 = vpop.f32.mrf.mxu0
  %v1234 = vadd.f32 0.0, %v1233
  %v1235 = vpop.f32.mrf.mxu0
  %1236 = vmatprep.mubr.bf16.mxu0 %v1017
  %1237 = vmatmul.mubr.bf16.gmra.mxu0 %v1016
  %v1238 = vpop.f32.mrf.mxu0
  %v1239 = vadd.f32 0.0, %v1238
  %v1240 = vpop.f32.mrf.mxu0
  %v1241 = vpop.f32.mrf.mxu0
  %v1242 = vadd.f32 0.0, %v1241
  %v1243 = vpop.f32.mrf.mxu0
  %1244 = vmatprep.mubr.bf16.mxu0 %v1030
  %1245 = vmatmul.mubr.bf16.gmra.mxu0 %v1029
  %v1246 = vpop.f32.mrf.mxu0
  %v1247 = vadd.f32 0.0, %v1246
  %v1248 = vpop.f32.mrf.mxu0
  %v1249 = vpop.f32.mrf.mxu0
  %v1250 = vadd.f32 0.0, %v1249
  %v1251 = vpop.f32.mrf.mxu0
  %1252 = vmatprep.mubr.bf16.mxu0 %v1043
  %1253 = vmatmul.mubr.bf16.gmra.mxu0 %v1042
  %v1254 = vpop.f32.mrf.mxu0
  %v1255 = vadd.f32 0.0, %v1254
  %v1256 = vpop.f32.mrf.mxu0
  %v1257 = vpop.f32.mrf.mxu0
  %v1258 = vadd.f32 0.0, %v1257
  %v1259 = vpop.f32.mrf.mxu0
  %1260 = vmatprep.mubr.bf16.mxu0 %v1056
  %1261 = vmatmul.mubr.bf16.gmra.mxu0 %v1055
  %v1262 = vpop.f32.mrf.mxu0
  %v1263 = vadd.f32 0.0, %v1262
  %v1264 = vpop.f32.mrf.mxu0
  %v1265 = vpop.f32.mrf.mxu0
  %v1266 = vadd.f32 0.0, %v1265
  %v1267 = vpop.f32.mrf.mxu0
  %1268 = vdwg.mxu0
  %1269 = vmatprep.subr.bf16.mxu0 0
  %1270 = vmatpush1.bf16.msra.mxu0 %v451
  %1271 = vmatprep.subr.bf16.mxu0 0
  %1272 = vmatpush1.bf16.msra.mxu0 %v450
  %1273 = vmatprep.subr.bf16.mxu0 0
  %1274 = vmatpush1.bf16.msra.mxu0 %v449
  %1275 = vmatprep.subr.bf16.mxu0 0
  %1276 = vmatpush1.bf16.msra.mxu0 %v448
  %1277 = vmatprep.subr.bf16.mxu0 0
  %1278 = vmatpush1.bf16.msra.mxu0 %v447
  %1279 = vmatprep.subr.bf16.mxu0 0
  %1280 = vmatpush1.bf16.msra.mxu0 %v446
  %1281 = vmatprep.subr.bf16.mxu0 0
  %1282 = vmatpush1.bf16.msra.mxu0 %v445
  %1283 = vmatprep.subr.bf16.mxu0 0
  %1284 = vmatpush1.bf16.msra.mxu0 %v444
  %1285 = vmatprep.subr.bf16.mxu0 0
  %1286 = vmatpush2.bf16.msra.mxu0 %v459
  %1287 = vmatprep.subr.bf16.mxu0 0
  %1288 = vmatpush2.bf16.msra.mxu0 %v458
  %1289 = vmatprep.subr.bf16.mxu0 0
  %1290 = vmatpush2.bf16.msra.mxu0 %v457
  %1291 = vmatprep.subr.bf16.mxu0 0
  %1292 = vmatpush2.bf16.msra.mxu0 %v456
  %1293 = vmatprep.subr.bf16.mxu0 0
  %1294 = vmatpush2.bf16.msra.mxu0 %v455
  %1295 = vmatprep.subr.bf16.mxu0 0
  %1296 = vmatpush2.bf16.msra.mxu0 %v454
  %1297 = vmatprep.subr.bf16.mxu0 0
  %1298 = vmatpush2.bf16.msra.mxu0 %v453
  %1299 = vmatprep.subr.bf16.mxu0 0
  %1300 = vmatpush2.bf16.msra.mxu0 %v452
  %1301 = vmatprep.mubr.bf16.mxu0 %v967
  %1302 = vmatmul.mubr.bf16.gmra.mxu0 %v966
  %v1303 = vpop.f32.mrf.mxu0
  %v1304 = vadd.f32 %v1207, %v1303
  %v1305 = vpop.f32.mrf.mxu0
  %v1306 = vpop.f32.mrf.mxu0
  %v1307 = vadd.f32 %v1210, %v1306
  %v1308 = vpop.f32.mrf.mxu0
  %1309 = vmatprep.mubr.bf16.mxu0 %v980
  %1310 = vmatmul.mubr.bf16.gmra.mxu0 %v979
  %v1311 = vpop.f32.mrf.mxu0
  %v1312 = vadd.f32 %v1215, %v1311
  %v1313 = vpop.f32.mrf.mxu0
  %v1314 = vpop.f32.mrf.mxu0
  %v1315 = vadd.f32 %v1218, %v1314
  %v1316 = vpop.f32.mrf.mxu0
  %1317 = vmatprep.mubr.bf16.mxu0 %v993
  %1318 = vmatmul.mubr.bf16.gmra.mxu0 %v992
  %v1319 = vpop.f32.mrf.mxu0
  %v1320 = vadd.f32 %v1223, %v1319
  %v1321 = vpop.f32.mrf.mxu0
  %v1322 = vpop.f32.mrf.mxu0
  %v1323 = vadd.f32 %v1226, %v1322
  %v1324 = vpop.f32.mrf.mxu0
  %1325 = vmatprep.mubr.bf16.mxu0 %v1006
  %1326 = vmatmul.mubr.bf16.gmra.mxu0 %v1005
  %v1327 = vpop.f32.mrf.mxu0
  %v1328 = vadd.f32 %v1231, %v1327
  %v1329 = vpop.f32.mrf.mxu0
  %v1330 = vpop.f32.mrf.mxu0
  %v1331 = vadd.f32 %v1234, %v1330
  %v1332 = vpop.f32.mrf.mxu0
  %1333 = vmatprep.mubr.bf16.mxu0 %v1019
  %1334 = vmatmul.mubr.bf16.gmra.mxu0 %v1018
  %v1335 = vpop.f32.mrf.mxu0
  %v1336 = vadd.f32 %v1239, %v1335
  %v1337 = vpop.f32.mrf.mxu0
  %v1338 = vpop.f32.mrf.mxu0
  %v1339 = vadd.f32 %v1242, %v1338
  %v1340 = vpop.f32.mrf.mxu0
  %1341 = vmatprep.mubr.bf16.mxu0 %v1032
  %1342 = vmatmul.mubr.bf16.gmra.mxu0 %v1031
  %v1343 = vpop.f32.mrf.mxu0
  %v1344 = vadd.f32 %v1247, %v1343
  %v1345 = vpop.f32.mrf.mxu0
  %v1346 = vpop.f32.mrf.mxu0
  %v1347 = vadd.f32 %v1250, %v1346
  %v1348 = vpop.f32.mrf.mxu0
  %1349 = vmatprep.mubr.bf16.mxu0 %v1045
  %1350 = vmatmul.mubr.bf16.gmra.mxu0 %v1044
  %v1351 = vpop.f32.mrf.mxu0
  %v1352 = vadd.f32 %v1255, %v1351
  %v1353 = vpop.f32.mrf.mxu0
  %v1354 = vpop.f32.mrf.mxu0
  %v1355 = vadd.f32 %v1258, %v1354
  %v1356 = vpop.f32.mrf.mxu0
  %1357 = vmatprep.mubr.bf16.mxu0 %v1058
  %1358 = vmatmul.mubr.bf16.gmra.mxu0 %v1057
  %v1359 = vpop.f32.mrf.mxu0
  %v1360 = vadd.f32 %v1263, %v1359
  %v1361 = vpop.f32.mrf.mxu0
  %v1362 = vpop.f32.mrf.mxu0
  %v1363 = vadd.f32 %v1266, %v1362
  %v1364 = vpop.f32.mrf.mxu0
  %1365 = vdwg.mxu0
  %1366 = vmatprep.subr.bf16.mxu0 0
  %1367 = vmatpush1.bf16.msra.mxu0 %v467
  %1368 = vmatprep.subr.bf16.mxu0 0
  %1369 = vmatpush1.bf16.msra.mxu0 %v466
  %1370 = vmatprep.subr.bf16.mxu0 0
  %1371 = vmatpush1.bf16.msra.mxu0 %v465
  %1372 = vmatprep.subr.bf16.mxu0 0
  %1373 = vmatpush1.bf16.msra.mxu0 %v464
  %1374 = vmatprep.subr.bf16.mxu0 0
  %1375 = vmatpush1.bf16.msra.mxu0 %v463
  %1376 = vmatprep.subr.bf16.mxu0 0
  %1377 = vmatpush1.bf16.msra.mxu0 %v462
  %1378 = vmatprep.subr.bf16.mxu0 0
  %1379 = vmatpush1.bf16.msra.mxu0 %v461
  %1380 = vmatprep.subr.bf16.mxu0 0
  %1381 = vmatpush1.bf16.msra.mxu0 %v460
  %1382 = vmatprep.subr.bf16.mxu0 0
  %1383 = vmatpush2.bf16.msra.mxu0 %v475
  %1384 = vmatprep.subr.bf16.mxu0 0
  %1385 = vmatpush2.bf16.msra.mxu0 %v474
  %1386 = vmatprep.subr.bf16.mxu0 0
  %1387 = vmatpush2.bf16.msra.mxu0 %v473
  %1388 = vmatprep.subr.bf16.mxu0 0
  %1389 = vmatpush2.bf16.msra.mxu0 %v472
  %1390 = vmatprep.subr.bf16.mxu0 0
  %1391 = vmatpush2.bf16.msra.mxu0 %v471
  %1392 = vmatprep.subr.bf16.mxu0 0
  %1393 = vmatpush2.bf16.msra.mxu0 %v470
  %1394 = vmatprep.subr.bf16.mxu0 0
  %1395 = vmatpush2.bf16.msra.mxu0 %v469
  %1396 = vmatprep.subr.bf16.mxu0 0
  %1397 = vmatpush2.bf16.msra.mxu0 %v468
  %1398 = vmatprep.mubr.bf16.mxu0 %v969
  %1399 = vmatmul.mubr.bf16.gmra.mxu0 %v968
  %v1400 = vpop.f32.mrf.mxu0
  %v1401 = vadd.f32 %v1304, %v1400
  %v1402 = vpop.f32.mrf.mxu0
  %v1403 = vpop.f32.mrf.mxu0
  %v1404 = vadd.f32 %v1307, %v1403
  %v1405 = vpop.f32.mrf.mxu0
  %1406 = vmatprep.mubr.bf16.mxu0 %v982
  %1407 = vmatmul.mubr.bf16.gmra.mxu0 %v981
  %v1408 = vpop.f32.mrf.mxu0
  %v1409 = vadd.f32 %v1312, %v1408
  %v1410 = vpop.f32.mrf.mxu0
  %v1411 = vpop.f32.mrf.mxu0
  %v1412 = vadd.f32 %v1315, %v1411
  %v1413 = vpop.f32.mrf.mxu0
  %1414 = vmatprep.mubr.bf16.mxu0 %v995
  %1415 = vmatmul.mubr.bf16.gmra.mxu0 %v994
  %v1416 = vpop.f32.mrf.mxu0
  %v1417 = vadd.f32 %v1320, %v1416
  %v1418 = vpop.f32.mrf.mxu0
  %v1419 = vpop.f32.mrf.mxu0
  %v1420 = vadd.f32 %v1323, %v1419
  %v1421 = vpop.f32.mrf.mxu0
  %1422 = vmatprep.mubr.bf16.mxu0 %v1008
  %1423 = vmatmul.mubr.bf16.gmra.mxu0 %v1007
  %v1424 = vpop.f32.mrf.mxu0
  %v1425 = vadd.f32 %v1328, %v1424
  %v1426 = vpop.f32.mrf.mxu0
  %v1427 = vpop.f32.mrf.mxu0
  %v1428 = vadd.f32 %v1331, %v1427
  %v1429 = vpop.f32.mrf.mxu0
  %1430 = vmatprep.mubr.bf16.mxu0 %v1021
  %1431 = vmatmul.mubr.bf16.gmra.mxu0 %v1020
  %v1432 = vpop.f32.mrf.mxu0
  %v1433 = vadd.f32 %v1336, %v1432
  %v1434 = vpop.f32.mrf.mxu0
  %v1435 = vpop.f32.mrf.mxu0
  %v1436 = vadd.f32 %v1339, %v1435
  %v1437 = vpop.f32.mrf.mxu0
  %1438 = vmatprep.mubr.bf16.mxu0 %v1034
  %1439 = vmatmul.mubr.bf16.gmra.mxu0 %v1033
  %v1440 = vpop.f32.mrf.mxu0
  %v1441 = vadd.f32 %v1344, %v1440
  %v1442 = vpop.f32.mrf.mxu0
  %v1443 = vpop.f32.mrf.mxu0
  %v1444 = vadd.f32 %v1347, %v1443
  %v1445 = vpop.f32.mrf.mxu0
  %1446 = vmatprep.mubr.bf16.mxu0 %v1047
  %1447 = vmatmul.mubr.bf16.gmra.mxu0 %v1046
  %v1448 = vpop.f32.mrf.mxu0
  %v1449 = vadd.f32 %v1352, %v1448
  %v1450 = vpop.f32.mrf.mxu0
  %v1451 = vpop.f32.mrf.mxu0
  %v1452 = vadd.f32 %v1355, %v1451
  %v1453 = vpop.f32.mrf.mxu0
  %1454 = vmatprep.mubr.bf16.mxu0 %v1060
  %1455 = vmatmul.mubr.bf16.gmra.mxu0 %v1059
  %v1456 = vpop.f32.mrf.mxu0
  %v1457 = vadd.f32 %v1360, %v1456
  %v1458 = vpop.f32.mrf.mxu0
  %v1459 = vpop.f32.mrf.mxu0
  %v1460 = vadd.f32 %v1363, %v1459
  %v1461 = vpop.f32.mrf.mxu0
  %1462 = vdwg.mxu0
  %1463 = vmatprep.subr.bf16.mxu0 0
  %1464 = vmatpush1.bf16.msra.mxu0 %v483
  %1465 = vmatprep.subr.bf16.mxu0 0
  %1466 = vmatpush1.bf16.msra.mxu0 %v482
  %1467 = vmatprep.subr.bf16.mxu0 0
  %1468 = vmatpush1.bf16.msra.mxu0 %v481
  %1469 = vmatprep.subr.bf16.mxu0 0
  %1470 = vmatpush1.bf16.msra.mxu0 %v480
  %1471 = vmatprep.subr.bf16.mxu0 0
  %1472 = vmatpush1.bf16.msra.mxu0 %v479
  %1473 = vmatprep.subr.bf16.mxu0 0
  %1474 = vmatpush1.bf16.msra.mxu0 %v478
  %1475 = vmatprep.subr.bf16.mxu0 0
  %1476 = vmatpush1.bf16.msra.mxu0 %v477
  %1477 = vmatprep.subr.bf16.mxu0 0
  %1478 = vmatpush1.bf16.msra.mxu0 %v476
  %1479 = vmatprep.subr.bf16.mxu0 0
  %1480 = vmatpush2.bf16.msra.mxu0 %v491
  %1481 = vmatprep.subr.bf16.mxu0 0
  %1482 = vmatpush2.bf16.msra.mxu0 %v490
  %1483 = vmatprep.subr.bf16.mxu0 0
  %1484 = vmatpush2.bf16.msra.mxu0 %v489
  %1485 = vmatprep.subr.bf16.mxu0 0
  %1486 = vmatpush2.bf16.msra.mxu0 %v488
  %1487 = vmatprep.subr.bf16.mxu0 0
  %1488 = vmatpush2.bf16.msra.mxu0 %v487
  %1489 = vmatprep.subr.bf16.mxu0 0
  %1490 = vmatpush2.bf16.msra.mxu0 %v486
  %1491 = vmatprep.subr.bf16.mxu0 0
  %1492 = vmatpush2.bf16.msra.mxu0 %v485
  %1493 = vmatprep.subr.bf16.mxu0 0
  %1494 = vmatpush2.bf16.msra.mxu0 %v484
  %1495 = vmatprep.mubr.bf16.mxu0 %v971
  %1496 = vmatmul.mubr.bf16.gmra.mxu0 %v970
  %v1497 = vpop.f32.mrf.mxu0
  %v1498 = vadd.f32 %v1401, %v1497
  %v1499 = vpop.f32.mrf.mxu0
  %v1500 = vpop.f32.mrf.mxu0
  %v1501 = vadd.f32 %v1404, %v1500
  %v1502 = vpop.f32.mrf.mxu0
  %1503 = vmatprep.mubr.bf16.mxu0 %v984
  %1504 = vmatmul.mubr.bf16.gmra.mxu0 %v983
  %v1505 = vpop.f32.mrf.mxu0
  %v1506 = vadd.f32 %v1409, %v1505
  %v1507 = vpop.f32.mrf.mxu0
  %v1508 = vpop.f32.mrf.mxu0
  %v1509 = vadd.f32 %v1412, %v1508
  %v1510 = vpop.f32.mrf.mxu0
  %1511 = vmatprep.mubr.bf16.mxu0 %v997
  %1512 = vmatmul.mubr.bf16.gmra.mxu0 %v996
  %v1513 = vpop.f32.mrf.mxu0
  %v1514 = vadd.f32 %v1417, %v1513
  %v1515 = vpop.f32.mrf.mxu0
  %v1516 = vpop.f32.mrf.mxu0
  %v1517 = vadd.f32 %v1420, %v1516
  %v1518 = vpop.f32.mrf.mxu0
  %1519 = vmatprep.mubr.bf16.mxu0 %v1010
  %1520 = vmatmul.mubr.bf16.gmra.mxu0 %v1009
  %v1521 = vpop.f32.mrf.mxu0
  %v1522 = vadd.f32 %v1425, %v1521
  %v1523 = vpop.f32.mrf.mxu0
  %v1524 = vpop.f32.mrf.mxu0
  %v1525 = vadd.f32 %v1428, %v1524
  %v1526 = vpop.f32.mrf.mxu0
  %1527 = vmatprep.mubr.bf16.mxu0 %v1023
  %1528 = vmatmul.mubr.bf16.gmra.mxu0 %v1022
  %v1529 = vpop.f32.mrf.mxu0
  %v1530 = vadd.f32 %v1433, %v1529
  %v1531 = vpop.f32.mrf.mxu0
  %v1532 = vpop.f32.mrf.mxu0
  %v1533 = vadd.f32 %v1436, %v1532
  %v1534 = vpop.f32.mrf.mxu0
  %1535 = vmatprep.mubr.bf16.mxu0 %v1036
  %1536 = vmatmul.mubr.bf16.gmra.mxu0 %v1035
  %v1537 = vpop.f32.mrf.mxu0
  %v1538 = vadd.f32 %v1441, %v1537
  %v1539 = vpop.f32.mrf.mxu0
  %v1540 = vpop.f32.mrf.mxu0
  %v1541 = vadd.f32 %v1444, %v1540
  %v1542 = vpop.f32.mrf.mxu0
  %1543 = vmatprep.mubr.bf16.mxu0 %v1049
  %1544 = vmatmul.mubr.bf16.gmra.mxu0 %v1048
  %v1545 = vpop.f32.mrf.mxu0
  %v1546 = vadd.f32 %v1449, %v1545
  %v1547 = vpop.f32.mrf.mxu0
  %v1548 = vpop.f32.mrf.mxu0
  %v1549 = vadd.f32 %v1452, %v1548
  %v1550 = vpop.f32.mrf.mxu0
  %1551 = vmatprep.mubr.bf16.mxu0 %v1062
  %1552 = vmatmul.mubr.bf16.gmra.mxu0 %v1061
  %v1553 = vpop.f32.mrf.mxu0
  %v1554 = vadd.f32 %v1457, %v1553
  %v1555 = vpop.f32.mrf.mxu0
  %v1556 = vpop.f32.mrf.mxu0
  %v1557 = vadd.f32 %v1460, %v1556
  %v1558 = vpop.f32.mrf.mxu0
  %1559 = vdwg.mxu0
  %1560 = vmatprep.subr.bf16.mxu0 0
  %1561 = vmatpush1.bf16.msra.mxu0 %v499
  %1562 = vmatprep.subr.bf16.mxu0 0
  %1563 = vmatpush1.bf16.msra.mxu0 %v498
  %1564 = vmatprep.subr.bf16.mxu0 0
  %1565 = vmatpush1.bf16.msra.mxu0 %v497
  %1566 = vmatprep.subr.bf16.mxu0 0
  %1567 = vmatpush1.bf16.msra.mxu0 %v496
  %1568 = vmatprep.subr.bf16.mxu0 0
  %1569 = vmatpush1.bf16.msra.mxu0 %v495
  %1570 = vmatprep.subr.bf16.mxu0 0
  %1571 = vmatpush1.bf16.msra.mxu0 %v494
  %1572 = vmatprep.subr.bf16.mxu0 0
  %1573 = vmatpush1.bf16.msra.mxu0 %v493
  %1574 = vmatprep.subr.bf16.mxu0 0
  %1575 = vmatpush1.bf16.msra.mxu0 %v492
  %1576 = vmatprep.subr.bf16.mxu0 0
  %1577 = vmatpush2.bf16.msra.mxu0 %v507
  %1578 = vmatprep.subr.bf16.mxu0 0
  %1579 = vmatpush2.bf16.msra.mxu0 %v506
  %1580 = vmatprep.subr.bf16.mxu0 0
  %1581 = vmatpush2.bf16.msra.mxu0 %v505
  %1582 = vmatprep.subr.bf16.mxu0 0
  %1583 = vmatpush2.bf16.msra.mxu0 %v504
  %1584 = vmatprep.subr.bf16.mxu0 0
  %1585 = vmatpush2.bf16.msra.mxu0 %v503
  %1586 = vmatprep.subr.bf16.mxu0 0
  %1587 = vmatpush2.bf16.msra.mxu0 %v502
  %1588 = vmatprep.subr.bf16.mxu0 0
  %1589 = vmatpush2.bf16.msra.mxu0 %v501
  %1590 = vmatprep.subr.bf16.mxu0 0
  %1591 = vmatpush2.bf16.msra.mxu0 %v500
  %1592 = vmatprep.mubr.bf16.mxu0 %v973
  %1593 = vmatmul.mubr.bf16.gmra.mxu0 %v972
  %v1594 = vpop.f32.mrf.mxu0
  %v1595 = vadd.f32 %v1498, %v1594
  %v1596 = vpop.f32.mrf.mxu0
  %v1597 = vpop.f32.mrf.mxu0
  %v1598 = vadd.f32 %v1501, %v1597
  %v1599 = vpop.f32.mrf.mxu0
  %1600 = vmatprep.mubr.bf16.mxu0 %v986
  %1601 = vmatmul.mubr.bf16.gmra.mxu0 %v985
  %v1602 = vpop.f32.mrf.mxu0
  %v1603 = vadd.f32 %v1506, %v1602
  %v1604 = vpop.f32.mrf.mxu0
  %v1605 = vpop.f32.mrf.mxu0
  %v1606 = vadd.f32 %v1509, %v1605
  %v1607 = vpop.f32.mrf.mxu0
  %1608 = vmatprep.mubr.bf16.mxu0 %v999
  %1609 = vmatmul.mubr.bf16.gmra.mxu0 %v998
  %v1610 = vpop.f32.mrf.mxu0
  %v1611 = vadd.f32 %v1514, %v1610
  %v1612 = vpop.f32.mrf.mxu0
  %v1613 = vpop.f32.mrf.mxu0
  %v1614 = vadd.f32 %v1517, %v1613
  %v1615 = vpop.f32.mrf.mxu0
  %1616 = vmatprep.mubr.bf16.mxu0 %v1012
  %1617 = vmatmul.mubr.bf16.gmra.mxu0 %v1011
  %v1618 = vpop.f32.mrf.mxu0
  %v1619 = vadd.f32 %v1522, %v1618
  %v1620 = vpop.f32.mrf.mxu0
  %v1621 = vpop.f32.mrf.mxu0
  %v1622 = vadd.f32 %v1525, %v1621
  %v1623 = vpop.f32.mrf.mxu0
  %1624 = vmatprep.mubr.bf16.mxu0 %v1025
  %1625 = vmatmul.mubr.bf16.gmra.mxu0 %v1024
  %v1626 = vpop.f32.mrf.mxu0
  %v1627 = vadd.f32 %v1530, %v1626
  %v1628 = vpop.f32.mrf.mxu0
  %v1629 = vpop.f32.mrf.mxu0
  %v1630 = vadd.f32 %v1533, %v1629
  %v1631 = vpop.f32.mrf.mxu0
  %1632 = vmatprep.mubr.bf16.mxu0 %v1038
  %1633 = vmatmul.mubr.bf16.gmra.mxu0 %v1037
  %v1634 = vpop.f32.mrf.mxu0
  %v1635 = vadd.f32 %v1538, %v1634
  %v1636 = vpop.f32.mrf.mxu0
  %v1637 = vpop.f32.mrf.mxu0
  %v1638 = vadd.f32 %v1541, %v1637
  %v1639 = vpop.f32.mrf.mxu0
  %1640 = vmatprep.mubr.bf16.mxu0 %v1051
  %1641 = vmatmul.mubr.bf16.gmra.mxu0 %v1050
  %v1642 = vpop.f32.mrf.mxu0
  %v1643 = vadd.f32 %v1546, %v1642
  %v1644 = vpop.f32.mrf.mxu0
  %v1645 = vpop.f32.mrf.mxu0
  %v1646 = vadd.f32 %v1549, %v1645
  %v1647 = vpop.f32.mrf.mxu0
  %1648 = vmatprep.mubr.bf16.mxu0 %v1064
  %1649 = vmatmul.mubr.bf16.gmra.mxu0 %v1063
  %v1650 = vpop.f32.mrf.mxu0
  %v1651 = vadd.f32 %v1554, %v1650
  %v1652 = vpop.f32.mrf.mxu0
  %v1653 = vpop.f32.mrf.mxu0
  %v1654 = vadd.f32 %v1557, %v1653
  %v1655 = vpop.f32.mrf.mxu0
  %1656 = vdwg.mxu0
  %1657 = vmatprep.subr.bf16.mxu0 0
  %1658 = vmatpush1.bf16.msra.mxu0 %v515
  %1659 = vmatprep.subr.bf16.mxu0 0
  %1660 = vmatpush1.bf16.msra.mxu0 %v514
  %1661 = vmatprep.subr.bf16.mxu0 0
  %1662 = vmatpush1.bf16.msra.mxu0 %v513
  %1663 = vmatprep.subr.bf16.mxu0 0
  %1664 = vmatpush1.bf16.msra.mxu0 %v512
  %1665 = vmatprep.subr.bf16.mxu0 0
  %1666 = vmatpush1.bf16.msra.mxu0 %v511
  %1667 = vmatprep.subr.bf16.mxu0 0
  %1668 = vmatpush1.bf16.msra.mxu0 %v510
  %1669 = vmatprep.subr.bf16.mxu0 0
  %1670 = vmatpush1.bf16.msra.mxu0 %v509
  %1671 = vmatprep.subr.bf16.mxu0 0
  %1672 = vmatpush1.bf16.msra.mxu0 %v508
  %1673 = vmatprep.subr.bf16.mxu0 0
  %1674 = vmatpush2.bf16.msra.mxu0 %v523
  %1675 = vmatprep.subr.bf16.mxu0 0
  %1676 = vmatpush2.bf16.msra.mxu0 %v522
  %1677 = vmatprep.subr.bf16.mxu0 0
  %1678 = vmatpush2.bf16.msra.mxu0 %v521
  %1679 = vmatprep.subr.bf16.mxu0 0
  %1680 = vmatpush2.bf16.msra.mxu0 %v520
  %1681 = vmatprep.subr.bf16.mxu0 0
  %1682 = vmatpush2.bf16.msra.mxu0 %v519
  %1683 = vmatprep.subr.bf16.mxu0 0
  %1684 = vmatpush2.bf16.msra.mxu0 %v518
  %1685 = vmatprep.subr.bf16.mxu0 0
  %1686 = vmatpush2.bf16.msra.mxu0 %v517
  %1687 = vmatprep.subr.bf16.mxu0 0
  %1688 = vmatpush2.bf16.msra.mxu0 %v516
  %1689 = vmatprep.mubr.bf16.mxu0 %v975
  %1690 = vmatmul.mubr.bf16.gmra.mxu0 %v974
  %v1691 = vpop.f32.mrf.mxu0
  %v1692 = vadd.f32 %v1595, %v1691
  %v1693 = vpop.f32.mrf.mxu0
  %v1694 = vpop.f32.mrf.mxu0
  %v1695 = vadd.f32 %v1598, %v1694
  %v1696 = vpop.f32.mrf.mxu0
  %1697 = vmatprep.mubr.bf16.mxu0 %v988
  %1698 = vmatmul.mubr.bf16.gmra.mxu0 %v987
  %v1699 = vpop.f32.mrf.mxu0
  %v1700 = vadd.f32 %v1603, %v1699
  %v1701 = vpop.f32.mrf.mxu0
  %v1702 = vpop.f32.mrf.mxu0
  %v1703 = vadd.f32 %v1606, %v1702
  %v1704 = vpop.f32.mrf.mxu0
  %1705 = vmatprep.mubr.bf16.mxu0 %v1001
  %1706 = vmatmul.mubr.bf16.gmra.mxu0 %v1000
  %v1707 = vpop.f32.mrf.mxu0
  %v1708 = vadd.f32 %v1611, %v1707
  %v1709 = vpop.f32.mrf.mxu0
  %v1710 = vpop.f32.mrf.mxu0
  %v1711 = vadd.f32 %v1614, %v1710
  %v1712 = vpop.f32.mrf.mxu0
  %1713 = vmatprep.mubr.bf16.mxu0 %v1014
  %1714 = vmatmul.mubr.bf16.gmra.mxu0 %v1013
  %v1715 = vpop.f32.mrf.mxu0
  %v1716 = vadd.f32 %v1619, %v1715
  %v1717 = vpop.f32.mrf.mxu0
  %v1718 = vpop.f32.mrf.mxu0
  %v1719 = vadd.f32 %v1622, %v1718
  %v1720 = vpop.f32.mrf.mxu0
  %1721 = vmatprep.mubr.bf16.mxu0 %v1027
  %1722 = vmatmul.mubr.bf16.gmra.mxu0 %v1026
  %v1723 = vpop.f32.mrf.mxu0
  %v1724 = vadd.f32 %v1627, %v1723
  %v1725 = vpop.f32.mrf.mxu0
  %v1726 = vpop.f32.mrf.mxu0
  %v1727 = vadd.f32 %v1630, %v1726
  %v1728 = vpop.f32.mrf.mxu0
  %1729 = vmatprep.mubr.bf16.mxu0 %v1040
  %1730 = vmatmul.mubr.bf16.gmra.mxu0 %v1039
  %v1731 = vpop.f32.mrf.mxu0
  %v1732 = vadd.f32 %v1635, %v1731
  %v1733 = vpop.f32.mrf.mxu0
  %v1734 = vpop.f32.mrf.mxu0
  %v1735 = vadd.f32 %v1638, %v1734
  %v1736 = vpop.f32.mrf.mxu0
  %1737 = vmatprep.mubr.bf16.mxu0 %v1053
  %1738 = vmatmul.mubr.bf16.gmra.mxu0 %v1052
  %v1739 = vpop.f32.mrf.mxu0
  %v1740 = vadd.f32 %v1643, %v1739
  %v1741 = vpop.f32.mrf.mxu0
  %v1742 = vpop.f32.mrf.mxu0
  %v1743 = vadd.f32 %v1646, %v1742
  %v1744 = vpop.f32.mrf.mxu0
  %1745 = vmatprep.mubr.bf16.mxu0 %v1066
  %1746 = vmatmul.mubr.bf16.gmra.mxu0 %v1065
  %v1747 = vpop.f32.mrf.mxu0
  %v1748 = vadd.f32 %v1651, %v1747
  %v1749 = vpop.f32.mrf.mxu0
  %v1750 = vpop.f32.mrf.mxu0
  %v1751 = vadd.f32 %v1654, %v1750
  %v1752 = vpop.f32.mrf.mxu0
  %1753 = vdwg.mxu0
  %1754 = vmatprep.subr.bf16.mxu0 0
  %1755 = vmatpush1.bf16.msra.mxu0 %v531
  %1756 = vmatprep.subr.bf16.mxu0 0
  %1757 = vmatpush1.bf16.msra.mxu0 %v530
  %1758 = vmatprep.subr.bf16.mxu0 0
  %1759 = vmatpush1.bf16.msra.mxu0 %v529
  %1760 = vmatprep.subr.bf16.mxu0 0
  %1761 = vmatpush1.bf16.msra.mxu0 %v528
  %1762 = vmatprep.subr.bf16.mxu0 0
  %1763 = vmatpush1.bf16.msra.mxu0 %v527
  %1764 = vmatprep.subr.bf16.mxu0 0
  %1765 = vmatpush1.bf16.msra.mxu0 %v526
  %1766 = vmatprep.subr.bf16.mxu0 0
  %1767 = vmatpush1.bf16.msra.mxu0 %v525
  %1768 = vmatprep.subr.bf16.mxu0 0
  %1769 = vmatpush1.bf16.msra.mxu0 %v524
  %1770 = vmatprep.subr.bf16.mxu0 0
  %1771 = vmatpush2.bf16.msra.mxu0 0
  %1772 = vmatprep.subr.bf16.mxu0 0
  %1773 = vmatpush2.bf16.msra.mxu0 0
  %1774 = vmatprep.subr.bf16.mxu0 0
  %1775 = vmatpush2.bf16.msra.mxu0 0
  %1776 = vmatprep.subr.bf16.mxu0 0
  %1777 = vmatpush2.bf16.msra.mxu0 0
  %1778 = vmatprep.subr.bf16.mxu0 0
  %1779 = vmatpush2.bf16.msra.mxu0 0
  %1780 = vmatprep.subr.bf16.mxu0 0
  %1781 = vmatpush2.bf16.msra.mxu0 0
  %1782 = vmatprep.subr.bf16.mxu0 0
  %1783 = vmatpush2.bf16.msra.mxu0 0
  %1784 = vmatprep.subr.bf16.mxu0 0
  %1785 = vmatpush2.bf16.msra.mxu0 0
  %1786 = vmatprep.mubr.bf16.mxu0 0
  %1787 = vmatmul.mubr.bf16.gmra.mxu0 %v976
  %v1788 = vpop.f32.mrf.mxu0
  %v1789 = vadd.f32 %v1692, %v1788
  %v1790 = vpop.f32.mrf.mxu0
  %v1791 = vpop.f32.mrf.mxu0
  %v1792 = vadd.f32 %v1695, %v1791
  %v1793 = vpop.f32.mrf.mxu0
  %1794 = vmatprep.mubr.bf16.mxu0 0
  %1795 = vmatmul.mubr.bf16.gmra.mxu0 %v989
  %v1796 = vpop.f32.mrf.mxu0
  %v1797 = vadd.f32 %v1700, %v1796
  %v1798 = vpop.f32.mrf.mxu0
  %v1799 = vpop.f32.mrf.mxu0
  %v1800 = vadd.f32 %v1703, %v1799
  %v1801 = vpop.f32.mrf.mxu0
  %1802 = vmatprep.mubr.bf16.mxu0 0
  %1803 = vmatmul.mubr.bf16.gmra.mxu0 %v1002
  %v1804 = vpop.f32.mrf.mxu0
  %v1805 = vadd.f32 %v1708, %v1804
  %v1806 = vpop.f32.mrf.mxu0
  %v1807 = vpop.f32.mrf.mxu0
  %v1808 = vadd.f32 %v1711, %v1807
  %v1809 = vpop.f32.mrf.mxu0
  %1810 = vmatprep.mubr.bf16.mxu0 0
  %1811 = vmatmul.mubr.bf16.gmra.mxu0 %v1015
  %v1812 = vpop.f32.mrf.mxu0
  %v1813 = vadd.f32 %v1716, %v1812
  %v1814 = vpop.f32.mrf.mxu0
  %v1815 = vpop.f32.mrf.mxu0
  %v1816 = vadd.f32 %v1719, %v1815
  %v1817 = vpop.f32.mrf.mxu0
  %1818 = vmatprep.mubr.bf16.mxu0 0
  %1819 = vmatmul.mubr.bf16.gmra.mxu0 %v1028
  %v1820 = vpop.f32.mrf.mxu0
  %v1821 = vadd.f32 %v1724, %v1820
  %v1822 = vpop.f32.mrf.mxu0
  %v1823 = vpop.f32.mrf.mxu0
  %v1824 = vadd.f32 %v1727, %v1823
  %v1825 = vpop.f32.mrf.mxu0
  %1826 = vmatprep.mubr.bf16.mxu0 0
  %1827 = vmatmul.mubr.bf16.gmra.mxu0 %v1041
  %v1828 = vpop.f32.mrf.mxu0
  %v1829 = vadd.f32 %v1732, %v1828
  %v1830 = vpop.f32.mrf.mxu0
  %v1831 = vpop.f32.mrf.mxu0
  %v1832 = vadd.f32 %v1735, %v1831
  %v1833 = vpop.f32.mrf.mxu0
  %1834 = vmatprep.mubr.bf16.mxu0 0
  %1835 = vmatmul.mubr.bf16.gmra.mxu0 %v1054
  %v1836 = vpop.f32.mrf.mxu0
  %v1837 = vadd.f32 %v1740, %v1836
  %v1838 = vpop.f32.mrf.mxu0
  %v1839 = vpop.f32.mrf.mxu0
  %v1840 = vadd.f32 %v1743, %v1839
  %v1841 = vpop.f32.mrf.mxu0
  %1842 = vmatprep.mubr.bf16.mxu0 0
  %1843 = vmatmul.mubr.bf16.gmra.mxu0 %v1067
  %v1844 = vpop.f32.mrf.mxu0
  %v1845 = vadd.f32 %v1748, %v1844
  %v1846 = vpop.f32.mrf.mxu0
  %v1847 = vpop.f32.mrf.mxu0
  %v1848 = vadd.f32 %v1751, %v1847
  %v1849 = vpop.f32.mrf.mxu0
  %1850 = vdwg.mxu0
  %vm1851 = vcmask 400384
  %1852 = vst.msk [vmem:[%s2] sm:$0xff] %vm1851, %v1789
  %1853 = vst.msk [vmem:[%s2 + $0x8] sm:$0xff] %vm1851, %v1792
  %1854 = vst.msk [vmem:[%s2 + $0x10] sm:$0xff] %vm1851, %v1797
  %1855 = vst.msk [vmem:[%s2 + $0x18] sm:$0xff] %vm1851, %v1800
  %1856 = vst.msk [vmem:[%s2 + $0x20] sm:$0xff] %vm1851, %v1805
  %1857 = vst.msk [vmem:[%s2 + $0x28] sm:$0xff] %vm1851, %v1808
  %1858 = vst.msk [vmem:[%s2 + $0x30] sm:$0xff] %vm1851, %v1813
  %1859 = vst.msk [vmem:[%s2 + $0x38] sm:$0xff] %vm1851, %v1816
  %1860 = vst.msk [vmem:[%s2 + $0x40] sm:$0xff] %vm1851, %v1821
  %1861 = vst.msk [vmem:[%s2 + $0x48] sm:$0xff] %vm1851, %v1824
  %1862 = vst.msk [vmem:[%s2 + $0x50] sm:$0xff] %vm1851, %v1829
  %1863 = vst.msk [vmem:[%s2 + $0x58] sm:$0xff] %vm1851, %v1832
  %1864 = vst.msk [vmem:[%s2 + $0x60] sm:$0xff] %vm1851, %v1837
  %1865 = vst.msk [vmem:[%s2 + $0x68] sm:$0xff] %vm1851, %v1840
  %1866 = vst.msk [vmem:[%s2 + $0x70] sm:$0xff] %vm1851, %v1845
  %1867 = vst.msk [vmem:[%s2 + $0x78] sm:$0xff] %vm1851, %v1848
  // Predicated region
  $region10: #{tpu_custom_call.1} parent=0 // pred_check
    _
  $region11: #{tpu_custom_call.1} parent=0 // pred_check_branch
    %1869 = sbr.rel (0) target = $region13
  $region12: #{tpu_custom_call.1} parent=0 // pred_region
    _
  $region13: #{tpu_custom_call.1} parent=0 // pred_fallthru
    _
  // Predicated region
  $region14: #{tpu_custom_call.1} parent=0 // pred_check
    _
  $region15: #{tpu_custom_call.1} parent=0 // pred_check_branch
    %1871 = sbr.rel (0) target = $region17
  $region16: #{tpu_custom_call.1} parent=0 // pred_region
    _
  $region17: #{tpu_custom_call.1} parent=0 // pred_fallthru
    _

</llo_original>
